<compile_context>
chip_gen: v5e
topology: v5e:2x2
jax: 0.10.0
libtpu: 0.0.40
codegen_flags: <defaults>
</compile_context>

<pallas_src>
import jax
import jax.numpy as jnp
from jax.experimental import pallas as pl
from jax.experimental.pallas import tpu as pltpu


# ----------------------------------------------------------------------------
# Kernel bodies
# ----------------------------------------------------------------------------
def _layer1_split_k(s_bf, a_bf, w1s_ref, w1a_ref, b1_ref):
    """Layer 1: cat[state,action] @ W1 + b1 as a split-K pair of matmuls, + ReLU."""
    h1 = (jnp.dot(s_bf, w1s_ref[...], preferred_element_type=jnp.float32)
          + jnp.dot(a_bf, w1a_ref[...], preferred_element_type=jnp.float32)
          + b1_ref[...])
    return jnp.maximum(h1, 0.0)                      # fp32 ReLU (v5e-safe)


def _critic_head(h1, w2_ref, b2_ref, wq_ref, bq_ref):
    """Layer 2 + ReLU + 1-wide head; returns a lane-dense (1, tb) q row."""
    h2 = jnp.dot(h1.astype(jnp.bfloat16), w2_ref[...],
                 preferred_element_type=jnp.float32) + b2_ref[...]
    h2 = jnp.maximum(h2, 0.0)
    # out_features == 1 head: VPU multiply + lane reduction (no N=1 MXU matmul),
    # relaid out lane-major so the q store is lane-dense (unmasked vst).
    q_row = jnp.sum(h2 * wq_ref[...], axis=-1).reshape(1, -1)      # (1, tb)
    return q_row + bq_ref[...]


def critic_kernel(s_ref, a_ref,
                  w1s_ref, w1a_ref, b1_ref, w2_ref, b2_ref, wq_ref, bq_ref,
                  q_ref):
    s_bf = s_ref[...].astype(jnp.bfloat16)
    a_bf = a_ref[...].astype(jnp.bfloat16)
    h1 = _layer1_split_k(s_bf, a_bf, w1s_ref, w1a_ref, b1_ref)
    q_ref[...] = _critic_head(h1, w2_ref, b2_ref, wq_ref, bq_ref)   # (1, tb)


def critic_pair_kernel(s_ref, a_ref,
                       w1s_ref, w1a_ref, b1_ref,
                       w21_ref, b21_ref, wq1_ref, bq1_ref,
                       w22_ref, b22_ref, wq2_ref, bq2_ref,
                       q_ref):
    """SAC twin critics fused: shared inputs, N-concatenated layer-1 weights,
    Q1/Q2 packed into one lane-dense (2, tb) output block."""
    s_bf = s_ref[...].astype(jnp.bfloat16)
    a_bf = a_ref[...].astype(jnp.bfloat16)
    fc1 = w21_ref.shape[0]                                   # 512
    h1_pair = _layer1_split_k(s_bf, a_bf, w1s_ref, w1a_ref, b1_ref)  # (tb, 2*fc1)
    # 512-lane split point is a multiple of 128 -> free static lane-slice views.
    q1 = _critic_head(h1_pair[:, :fc1], w21_ref, b21_ref, wq1_ref, bq1_ref)
    q2 = _critic_head(h1_pair[:, fc1:], w22_ref, b22_ref, wq2_ref, bq2_ref)
    q_ref[...] = jnp.concatenate([q1, q2], axis=0)           # (2, tb)


# ----------------------------------------------------------------------------
# Tiling / spec helpers
# ----------------------------------------------------------------------------
def _is_v7x():
    try:
        return "v7" in jax.devices()[0].device_kind.lower()
    except Exception:
        return False


def _batch_tiling(B):
    """Pad B to a multiple of 8. Single full-batch tile up to 512 rows; larger
    batches use tiles of 128..512 rows that are multiples of 128 (so the
    lane-dense q output block stays legal). On v7x keep >=2 grid programs so
    both TensorCores get work on the 'parallel' batch axis."""
    pad_B = max(8, -(-B // 8) * 8)
    n_tiles = -(-pad_B // 512)                       # 512-row tile cap
    if _is_v7x() and pad_B >= 256:
        n_tiles = max(n_tiles, 2)
    if n_tiles == 1:
        return pad_B, pad_B                          # one full-batch tile
    rows = -(-pad_B // n_tiles)
    tb = min(512, max(128, -(-rows // 128) * 128))   # multiple of 128
    pad_B = -(-pad_B // tb) * tb
    return pad_B, tb


def _pad_rows(x, pad_B):
    B = x.shape[0]
    return x if B == pad_B else jnp.pad(x, ((0, pad_B - B), (0, 0)))


def _resident(arr):
    """Full-array block, same block index for every batch tile -> weight stays
    VMEM-resident (no re-DMA across grid steps)."""
    n = arr.ndim
    return pl.BlockSpec(arr.shape, lambda i, _n=n: (0,) * _n)


def _nbytes(x):
    return int(x.size) * x.dtype.itemsize


# ----------------------------------------------------------------------------
# Wrappers
# ----------------------------------------------------------------------------
def critic_forward(state, action, params):
    """Single critic == CriticNetwork.forward. One pallas_call, batch tiled over
    a 'parallel' grid axis, lane-dense (1, pad_B) q output."""
    w1s, w1a, b1, w2, b2, wq, bq = params
    B, s_dim = state.shape
    a_dim = action.shape[1]
    pad_B, tb = _batch_tiling(B)
    s = _pad_rows(state, pad_B)
    a = _pad_rows(action, pad_B)

    fc1 = w1s.shape[1]
    fc2 = w2.shape[1]
    flops = 2 * pad_B * ((s_dim + a_dim) * fc1 + fc1 * fc2 + fc2)
    bytes_accessed = (sum(_nbytes(p) for p in params)
                      + _nbytes(s) + _nbytes(a) + pad_B * 4)

    q_lane = pl.pallas_call(
        critic_kernel,
        out_shape=jax.ShapeDtypeStruct((1, pad_B), jnp.float32),
        grid=(pad_B // tb,),
        in_specs=[pl.BlockSpec((tb, s_dim), lambda i: (i, 0)),
                  pl.BlockSpec((tb, a_dim), lambda i: (i, 0)),
                  *[_resident(p) for p in params]],
        out_specs=pl.BlockSpec((1, tb), lambda i: (0, i)),
        compiler_params=pltpu.CompilerParams(
            dimension_semantics=("parallel",)),
        cost_estimate=pl.CostEstimate(flops=flops, transcendentals=0,
                                      bytes_accessed=bytes_accessed),
    )(s, a, *params)
    return q_lane[0, :B].reshape(B, 1)


def critic_pair_forward(state, action, pair_params):
    """Fused SAC twin critics: Q1 and Q2 from one launch; Q1/Q2 packed in one
    lane-dense (2, pad_B) output."""
    (w1s, w1a, b1,
     w21, b21, wq1, bq1,
     w22, b22, wq2, bq2) = pair_params
    B, s_dim = state.shape
    a_dim = action.shape[1]
    pad_B, tb = _batch_tiling(B)
    s = _pad_rows(state, pad_B)
    a = _pad_rows(action, pad_B)

    fc1 = w21.shape[0]
    fc2 = w21.shape[1]
    flops = 2 * pad_B * ((s_dim + a_dim) * 2 * fc1 + 2 * fc1 * fc2 + 2 * fc2)
    bytes_accessed = (sum(_nbytes(p) for p in pair_params)
                      + _nbytes(s) + _nbytes(a) + 2 * pad_B * 4)

    q_pair = pl.pallas_call(
        critic_pair_kernel,
        out_shape=jax.ShapeDtypeStruct((2, pad_B), jnp.float32),
        grid=(pad_B // tb,),
        in_specs=[pl.BlockSpec((tb, s_dim), lambda i: (i, 0)),
                  pl.BlockSpec((tb, a_dim), lambda i: (i, 0)),
                  *[_resident(p) for p in pair_params]],
        out_specs=pl.BlockSpec((2, tb), lambda i: (0, i)),
        compiler_params=pltpu.CompilerParams(
            dimension_semantics=("parallel",)),
        cost_estimate=pl.CostEstimate(flops=flops, transcendentals=0,
                                      bytes_accessed=bytes_accessed),
    )(s, a, *pair_params)
    q1 = q_pair[0, :B].reshape(B, 1)
    q2 = q_pair[1, :B].reshape(B, 1)
    return q1, q2


# ----------------------------------------------------------------------------
# Parameter construction (done once, outside the per-step call)
# ----------------------------------------------------------------------------
def init_linear(key, fan_in, fan_out):
    """Mimics torch.nn.Linear init (uniform +/- 1/sqrt(fan_in)); weight stored
    transposed, i.e. (in_features, out_features)."""
    kw, kb = jax.random.split(key)
    bound = 1.0 / (fan_in ** 0.5)
    w = jax.random.uniform(kw, (fan_in, fan_out), jnp.float32, -bound, bound)
    b = jax.random.uniform(kb, (1, fan_out), jnp.float32, -bound, bound)
    return w, b


def prepare_critic_params(key, state_dim, n_actions, fc1_dims=512, fc2_dims=512):
    """Kernel-layout params: w1 pre-split (state/action), heavy weights bf16,
    head weight as a (1, fc2) row for the lane reduction, bias q as (1, 1)."""
    k1, k2, k3 = jax.random.split(key, 3)
    w1, b1 = init_linear(k1, state_dim + n_actions, fc1_dims)
    w2, b2 = init_linear(k2, fc1_dims, fc2_dims)
    wq, bq = init_linear(k3, fc2_dims, 1)

    w1s = w1[:state_dim].astype(jnp.bfloat16)          # (state_dim, fc1)
    w1a = w1[state_dim:].astype(jnp.bfloat16)          # (n_actions, fc1)
    w2b = w2.astype(jnp.bfloat16)                      # (fc1, fc2) -- dominant DMA
    wq_row = wq.reshape(1, fc2_dims).astype(jnp.float32)
    bq11 = bq.reshape(1, 1).astype(jnp.float32)
    return (w1s, w1a, b1, w2b, b2, wq_row, bq11)


def prepare_pair_params(params1, params2):
    """N-concatenate the two critics' layer-1 weights so the pair kernel does one
    split-K layer-1 matmul; layer-2/head weights stay per-critic."""
    w1s1, w1a1, b11, w21, b21, wq1, bq1 = params1
    w1s2, w1a2, b12, w22, b22, wq2, bq2 = params2
    w1s_pair = jnp.concatenate([w1s1, w1s2], axis=1)   # (s_dim, 2*fc1) bf16
    w1a_pair = jnp.concatenate([w1a1, w1a2], axis=1)   # (a_dim, 2*fc1) bf16
    b1_pair = jnp.concatenate([b11, b12], axis=1)      # (1, 2*fc1) fp32
    return (w1s_pair, w1a_pair, b1_pair,
            w21, b21, wq1, bq1,
            w22, b22, wq2, bq2)


def reference_forward(state, action, params):
    """Pure-JAX reference mirroring the kernel math (bf16 matmuls, fp32 accum)."""
    w1s, w1a, b1, w2, b2, wq, bq = params
    s = state.astype(jnp.bfloat16)
    a = action.astype(jnp.bfloat16)
    h1 = (jnp.dot(s, w1s, preferred_element_type=jnp.float32)
          + jnp.dot(a, w1a, preferred_element_type=jnp.float32) + b1)
    h1 = jnp.maximum(h1, 0.0)
    h2 = jnp.dot(h1.astype(jnp.bfloat16), w2,
                 preferred_element_type=jnp.float32) + b2
    h2 = jnp.maximum(h2, 0.0)
    return jnp.sum(h2 * wq, axis=-1, keepdims=True) + bq


# ----------------------------------------------------------------------------
if __name__ == "__main__":
    # Small shapes consistent with the module's forward.
    B = 32
    input_dims = (8,)          # state feature dim
    n_actions = 4
    state_dim = input_dims[0]

    key = jax.random.PRNGKey(0)
    k_s, k_a, k_p1, k_p2, k_s2, k_a2 = jax.random.split(key, 6)

    state = jax.random.normal(k_s, (B, state_dim), jnp.float32)
    action = jax.random.normal(k_a, (B, n_actions), jnp.float32)

    params1 = prepare_critic_params(k_p1, state_dim, n_actions)
    params2 = prepare_critic_params(k_p2, state_dim, n_actions)
    pair_params = prepare_pair_params(params1, params2)

    # Single-critic kernel (matches CriticNetwork.forward).
    q = critic_forward(state, action, params1)
    jax.block_until_ready(q)

    # Fused twin-critic kernel (SAC Q1/Q2, one launch, shared inputs).
    q1, q2 = critic_pair_forward(state, action, pair_params)
    jax.block_until_ready((q1, q2))

    # Correctness checks against the pure-JAX reference.
    q_ref1 = reference_forward(state, action, params1)
    q_ref2 = reference_forward(state, action, params2)
    assert q.shape == (B, 1) and q1.shape == (B, 1) and q2.shape == (B, 1)
    assert jnp.allclose(q, q_ref1, atol=1e-3, rtol=1e-3)
    assert jnp.allclose(q1, q_ref1, atol=1e-3, rtol=1e-3)
    assert jnp.allclose(q2, q_ref2, atol=1e-3, rtol=1e-3)

    # Multi-tile path: exercises >1 grid program on the 'parallel' batch axis
    # and the lane-dense output blocks across tiles.
    B2 = 640
    state_b = jax.random.normal(k_s2, (B2, state_dim), jnp.float32)
    action_b = jax.random.normal(k_a2, (B2, n_actions), jnp.float32)
    q1b, q2b = critic_pair_forward(state_b, action_b, pair_params)
    jax.block_until_ready((q1b, q2b))
    assert jnp.allclose(q1b, reference_forward(state_b, action_b, params1),
                        atol=1e-3, rtol=1e-3)
    assert jnp.allclose(q2b, reference_forward(state_b, action_b, params2),
                        atol=1e-3, rtol=1e-3)

    # TODO(synk): Adam optimizer state and checkpoint save/load are host-side
    # (not part of forward) and are not implemented as kernels.

    print("KERNEL_OK")
</pallas_src>

<mosaic_0001>
module attributes {stable_mosaic.version = 11 : i64} {
  func.func @critic_kernel(%arg0: i32, %arg1: memref<32x8xf32, #tpu.memory_space<vmem>>, %arg2: memref<32x4xf32, #tpu.memory_space<vmem>>, %arg3: memref<8x512xbf16, #tpu.memory_space<vmem>>, %arg4: memref<4x512xbf16, #tpu.memory_space<vmem>>, %arg5: memref<1x512xf32, #tpu.memory_space<vmem>>, %arg6: memref<512x512xbf16, #tpu.memory_space<vmem>>, %arg7: memref<1x512xf32, #tpu.memory_space<vmem>>, %arg8: memref<1x512xf32, #tpu.memory_space<vmem>>, %arg9: memref<1x1xf32, #tpu.memory_space<vmem>>, %arg10: memref<1x32xf32, #tpu.memory_space<vmem>>) attributes {dimension_semantics = [#tpu.dimension_semantics<parallel>], iteration_bounds = array<i64: 1>, scalar_prefetch = 0 : i64, scratch_operands = 0 : i64, tpu.core_type = #tpu.core_type<tc>, window_params = [{transform_indices = @transform_0, window_bounds = array<i64: 32, 8>}, {transform_indices = @transform_1, window_bounds = array<i64: 32, 4>}, {pipeline_mode = #tpu.pipeline_mode<synchronous>, transform_indices = @transform_2, window_bounds = array<i64: 8, 512>}, {pipeline_mode = #tpu.pipeline_mode<synchronous>, transform_indices = @transform_3, window_bounds = array<i64: 4, 512>}, {pipeline_mode = #tpu.pipeline_mode<synchronous>, transform_indices = @transform_4, window_bounds = array<i64: 1, 512>}, {pipeline_mode = #tpu.pipeline_mode<synchronous>, transform_indices = @transform_5, window_bounds = array<i64: 512, 512>}, {pipeline_mode = #tpu.pipeline_mode<synchronous>, transform_indices = @transform_6, window_bounds = array<i64: 1, 512>}, {pipeline_mode = #tpu.pipeline_mode<synchronous>, transform_indices = @transform_7, window_bounds = array<i64: 1, 512>}, {pipeline_mode = #tpu.pipeline_mode<synchronous>, transform_indices = @transform_8, window_bounds = array<i64: 1, 1>}, {transform_indices = @transform_9, window_bounds = array<i64: 1, 32>}]} {
    %c0 = arith.constant 0 : index
    %c0_0 = arith.constant 0 : index
    %0 = vector.load %arg1[%c0, %c0_0] : memref<32x8xf32, #tpu.memory_space<vmem>>, vector<32x8xf32>
    %1 = arith.truncf %0 : vector<32x8xf32> to vector<32x8xbf16>
    %c0_1 = arith.constant 0 : index
    %c0_2 = arith.constant 0 : index
    %2 = vector.load %arg2[%c0_1, %c0_2] : memref<32x4xf32, #tpu.memory_space<vmem>>, vector<32x4xf32>
    %3 = arith.truncf %2 : vector<32x4xf32> to vector<32x4xbf16>
    %c0_3 = arith.constant 0 : index
    %c0_4 = arith.constant 0 : index
    %4 = vector.load %arg3[%c0_3, %c0_4] : memref<8x512xbf16, #tpu.memory_space<vmem>>, vector<8x512xbf16>
    %cst = arith.constant dense<0.000000e+00> : vector<32x512xf32>
    %5 = tpu.matmul %1, %4, %cst {dimension_numbers = #tpu.dot_dimension_numbers<[1], [0], [0], [1], [0, 0, 1, 1], [], []>} : vector<32x8xbf16>, vector<8x512xbf16>, vector<32x512xf32> -> vector<32x512xf32>
    %c0_5 = arith.constant 0 : index
    %c0_6 = arith.constant 0 : index
    %6 = vector.load %arg4[%c0_5, %c0_6] : memref<4x512xbf16, #tpu.memory_space<vmem>>, vector<4x512xbf16>
    %cst_7 = arith.constant dense<0.000000e+00> : vector<32x512xf32>
    %7 = tpu.matmul %3, %6, %cst_7 {dimension_numbers = #tpu.dot_dimension_numbers<[1], [0], [0], [1], [0, 0, 1, 1], [], []>} : vector<32x4xbf16>, vector<4x512xbf16>, vector<32x512xf32> -> vector<32x512xf32>
    %8 = arith.addf %5, %7 : vector<32x512xf32>
    %c0_8 = arith.constant 0 : index
    %c0_9 = arith.constant 0 : index
    %9 = vector.load %arg5[%c0_8, %c0_9] : memref<1x512xf32, #tpu.memory_space<vmem>>, vector<1x512xf32>
    %10 = vector.broadcast %9 : vector<1x512xf32> to vector<32x512xf32>
    %11 = arith.addf %8, %10 : vector<32x512xf32>
    %cst_10 = arith.constant 0.000000e+00 : f32
    %12 = vector.broadcast %cst_10 : f32 to vector<32x512xf32>
    %13 = arith.maximumf %11, %12 : vector<32x512xf32>
    %14 = arith.truncf %13 : vector<32x512xf32> to vector<32x512xbf16>
    %c0_11 = arith.constant 0 : index
    %c0_12 = arith.constant 0 : index
    %15 = vector.load %arg6[%c0_11, %c0_12] : memref<512x512xbf16, #tpu.memory_space<vmem>>, vector<512x512xbf16>
    %cst_13 = arith.constant dense<0.000000e+00> : vector<32x512xf32>
    %16 = tpu.matmul %14, %15, %cst_13 {dimension_numbers = #tpu.dot_dimension_numbers<[1], [0], [0], [1], [0, 0, 1, 1], [], []>} : vector<32x512xbf16>, vector<512x512xbf16>, vector<32x512xf32> -> vector<32x512xf32>
    %c0_14 = arith.constant 0 : index
    %c0_15 = arith.constant 0 : index
    %17 = vector.load %arg7[%c0_14, %c0_15] : memref<1x512xf32, #tpu.memory_space<vmem>>, vector<1x512xf32>
    %18 = vector.broadcast %17 : vector<1x512xf32> to vector<32x512xf32>
    %19 = arith.addf %16, %18 : vector<32x512xf32>
    %cst_16 = arith.constant 0.000000e+00 : f32
    %20 = vector.broadcast %cst_16 : f32 to vector<32x512xf32>
    %21 = arith.maximumf %19, %20 : vector<32x512xf32>
    %c0_17 = arith.constant 0 : index
    %c0_18 = arith.constant 0 : index
    %22 = vector.load %arg8[%c0_17, %c0_18] : memref<1x512xf32, #tpu.memory_space<vmem>>, vector<1x512xf32>
    %23 = vector.broadcast %22 : vector<1x512xf32> to vector<32x512xf32>
    %24 = arith.mulf %21, %23 : vector<32x512xf32>
    %cst_19 = arith.constant dense<0.000000e+00> : vector<32xf32>
    %25 = vector.multi_reduction <add>, %24, %cst_19 [1] : vector<32x512xf32> to vector<32xf32>
    %26 = vector.shape_cast %25 : vector<32xf32> to vector<1x32xf32>
    %c0_20 = arith.constant 0 : index
    %c0_21 = arith.constant 0 : index
    %27 = vector.load %arg9[%c0_20, %c0_21] : memref<1x1xf32, #tpu.memory_space<vmem>>, vector<1x1xf32>
    %28 = vector.broadcast %27 : vector<1x1xf32> to vector<1x32xf32>
    %29 = arith.addf %26, %28 : vector<1x32xf32>
    %c0_22 = arith.constant 0 : index
    %c0_23 = arith.constant 0 : index
    %30 = vector.load %arg10[%c0_22, %c0_23] : memref<1x32xf32, #tpu.memory_space<vmem>>, vector<1x32xf32>
    tpu.vector_store %arg10[%c0_22, %c0_23], %29 {strides = array<i32>} : memref<1x32xf32, #tpu.memory_space<vmem>>, vector<1x32xf32>,
    return
  }
  func.func @transform_0(%arg0: i32) -> (i32, i32) {
    %c0_i32 = arith.constant 0 : i32
    %c0_i32_0 = arith.constant 0 : i32
    return %arg0, %c0_i32 : i32, i32
  }
  func.func @transform_1(%arg0: i32) -> (i32, i32) {
    %c0_i32 = arith.constant 0 : i32
    %c0_i32_0 = arith.constant 0 : i32
    return %arg0, %c0_i32 : i32, i32
  }
  func.func @transform_2(%arg0: i32) -> (i32, i32) {
    %c0_i32 = arith.constant 0 : i32
    %c0_i32_0 = arith.constant 0 : i32
    %c0_i32_1 = arith.constant 0 : i32
    return %c0_i32, %c0_i32_0 : i32, i32
  }
  func.func @transform_3(%arg0: i32) -> (i32, i32) {
    %c0_i32 = arith.constant 0 : i32
    %c0_i32_0 = arith.constant 0 : i32
    %c0_i32_1 = arith.constant 0 : i32
    return %c0_i32, %c0_i32_0 : i32, i32
  }
  func.func @transform_4(%arg0: i32) -> (i32, i32) {
    %c0_i32 = arith.constant 0 : i32
    %c0_i32_0 = arith.constant 0 : i32
    %c0_i32_1 = arith.constant 0 : i32
    return %c0_i32, %c0_i32_0 : i32, i32
  }
  func.func @transform_5(%arg0: i32) -> (i32, i32) {
    %c0_i32 = arith.constant 0 : i32
    %c0_i32_0 = arith.constant 0 : i32
    %c0_i32_1 = arith.constant 0 : i32
    return %c0_i32, %c0_i32_0 : i32, i32
  }
  func.func @transform_6(%arg0: i32) -> (i32, i32) {
    %c0_i32 = arith.constant 0 : i32
    %c0_i32_0 = arith.constant 0 : i32
    %c0_i32_1 = arith.constant 0 : i32
    return %c0_i32, %c0_i32_0 : i32, i32
  }
  func.func @transform_7(%arg0: i32) -> (i32, i32) {
    %c0_i32 = arith.constant 0 : i32
    %c0_i32_0 = arith.constant 0 : i32
    %c0_i32_1 = arith.constant 0 : i32
    return %c0_i32, %c0_i32_0 : i32, i32
  }
  func.func @transform_8(%arg0: i32) -> (i32, i32) {
    %c0_i32 = arith.constant 0 : i32
    %c0_i32_0 = arith.constant 0 : i32
    %c0_i32_1 = arith.constant 0 : i32
    return %c0_i32, %c0_i32_0 : i32, i32
  }
  func.func @transform_9(%arg0: i32) -> (i32, i32) {
    %c0_i32 = arith.constant 0 : i32
    %c0_i32_0 = arith.constant 0 : i32
    return %c0_i32, %arg0 : i32, i32
  }
}

</mosaic_0001>

<llo_original>
// kernel: tpu_custom_call.1
$region0: #{tpu_custom_call.1}
  #allocation0 [shape = 'u32[]', space=smem, size = 0x4, offset = 0x4, fixed_abs, tag = 'smem constant byte address 0x4 - core index']
  #allocation1 [shape = 'u32[72,128]{1,0:T(1,128)}', space=vmem, size = 0x9000, scoped, tag = 'internal scratch']
  #allocation2 [shape = 'f32[1,1]{1,0:T(1,128)S(1)}', space=vmem, size = 0x200, scoped, tag = 'scoped memory for tpu_custom_call.1']
  %s0 = inlined_call_operand.vmem [shape: f32[32,8], index: 0, kind: input, shape index: {}]
  %s1 = inlined_call_operand.vmem [shape: f32[32,4], index: 1, kind: input, shape index: {}]
  %s2 = inlined_call_operand.vmem [shape: bf16[8,512], index: 2, kind: input, shape index: {}]
  %s3 = inlined_call_operand.vmem [shape: bf16[4,512], index: 3, kind: input, shape index: {}]
  %s4 = inlined_call_operand.vmem [shape: f32[1,512], index: 4, kind: input, shape index: {}]
  %s5 = inlined_call_operand.hbm [shape: bf16[512,512], index: 5, kind: input, shape index: {}]
  %s6 = inlined_call_operand.vmem [shape: f32[1,512], index: 6, kind: input, shape index: {}]
  %s7 = inlined_call_operand.vmem [shape: f32[1,512], index: 7, kind: input, shape index: {}]
  %s8 = inlined_call_operand.<no memory space> [shape: f32[1,1], index: 8, kind: input, shape index: {}]
  %s9 = inlined_call_operand.hbm [shape: f32[1,32], index: 9, kind: output, shape index: {}]
  %s10 = sld [smem:[#allocation0]]
  $region50: #{tpu_custom_call.1} parent=0
    _
  %s12 = ssub.s32 1, %s10
  %s13 = scalar_select 0, %s12, %s10
  %v14 = vstv %s8
  %15 = vst [vmem:[#allocation2] sm:$0x1] %v14
  $region1: #{tpu_custom_call.1} parent=0
    #allocation3 [shape = 'u8[524288]{0}', space=vmem, size = 0x80000, scoped, tag = 'input window, operand 5, single buffered']
    #allocation4 [shape = 's32[1]{0}', space=sflag, size = 0x4, scoped, tag = 'scoped memory for tpu_custom_call.1']
    #allocation5 [shape = 's32[1]{0}', space=sflag, size = 0x4, scoped, tag = 'scoped memory for tpu_custom_call.1']
    #allocation6 [shape = 'u8[512]{0}', space=vmem, size = 0x400, scoped, tag = 'output window, operand 0, single buffered']
    %16 = vsyncpa [#allocation4], 0
    %17 = vsyncpa [#allocation5], 0
    // Predicated region
    $region2: #{tpu_custom_call.1} parent=1 // pred_check
      _
    $region3: #{tpu_custom_call.1} parent=1 // pred_check_branch
      %19 = sbr.rel (0) target = $region5
    $region4: #{tpu_custom_call.1} parent=1 // pred_region
      _
    $region5: #{tpu_custom_call.1} parent=1 // pred_fallthru
      _
    // Predicated region
    $region6: #{tpu_custom_call.1} parent=1 // pred_check
      _
    $region7: #{tpu_custom_call.1} parent=1 // pred_check_branch
      %21 = sbr.rel (0) target = $region9
    $region8: #{tpu_custom_call.1} parent=1 // pred_region
      _
    $region9: #{tpu_custom_call.1} parent=1 // pred_fallthru
      _
    // Predicated region
    $region10: #{tpu_custom_call.1} parent=1 // pred_check
      _
    $region11: #{tpu_custom_call.1} parent=1 // pred_check_branch
      %23 = sbr.rel (0) target = $region13
    $region12: #{tpu_custom_call.1} parent=1 // pred_region
      _
    $region13: #{tpu_custom_call.1} parent=1 // pred_fallthru
      _
    // Predicated region
    $region14: #{tpu_custom_call.1} parent=1 // pred_check
      _
    $region15: #{tpu_custom_call.1} parent=1 // pred_check_branch
      %25 = sbr.rel (0) target = $region17
    $region16: #{tpu_custom_call.1} parent=1 // pred_region
      _
    $region17: #{tpu_custom_call.1} parent=1 // pred_fallthru
      _
    // Predicated region
    $region18: #{tpu_custom_call.1} parent=1 // pred_check
      _
    $region19: #{tpu_custom_call.1} parent=1 // pred_check_branch
      %27 = sbr.rel (0) target = $region21
    $region20: #{tpu_custom_call.1} parent=1 // pred_region
      _
    $region21: #{tpu_custom_call.1} parent=1 // pred_fallthru
      _
    // Predicated region
    $region22: #{tpu_custom_call.1} parent=1 // pred_check
      _
    $region23: #{tpu_custom_call.1} parent=1 // pred_check_branch
      %29 = sbr.rel (0) target = $region25
    $region24: #{tpu_custom_call.1} parent=1 // pred_region
      %31 = vsyncadd [#allocation4], 0
      %s32 = sshll.u32 %s5, 4
      %s33 = int_to_ptr.hbm [resolvable:$true] %s32
      %s34 = sshll.u32 [#allocation3], 4
      %s35 = int_to_ptr.vmem [resolvable:$true] %s34
      %40 = dma.hbm_to_vmem [thread:$0]  %s33, 16384, %s35, [#allocation4], 256, 256, 16
    $region25: #{tpu_custom_call.1} parent=1 // pred_fallthru
      _
    // Predicated region
    $region26: #{tpu_custom_call.1} parent=1 // pred_check
      _
    $region27: #{tpu_custom_call.1} parent=1 // pred_check_branch
      %42 = sbr.rel (0) target = $region29
    $region28: #{tpu_custom_call.1} parent=1 // pred_region
      _
    $region29: #{tpu_custom_call.1} parent=1 // pred_fallthru
      _
    // Predicated region
    $region30: #{tpu_custom_call.1} parent=1 // pred_check
      _
    $region31: #{tpu_custom_call.1} parent=1 // pred_check_branch
      %44 = sbr.rel (0) target = $region33
    $region32: #{tpu_custom_call.1} parent=1 // pred_region
      _
    $region33: #{tpu_custom_call.1} parent=1 // pred_fallthru
      _
    // Predicated region
    $region34: #{tpu_custom_call.1} parent=1 // pred_check
      _
    $region35: #{tpu_custom_call.1} parent=1 // pred_check_branch
      %46 = sbr.rel (0) target = $region37
    $region36: #{tpu_custom_call.1} parent=1 // pred_region
      _
    $region37: #{tpu_custom_call.1} parent=1 // pred_fallthru
      _
    // Predicated region
    $region38: #{tpu_custom_call.1} parent=1 // pred_check
      _
    $region39: #{tpu_custom_call.1} parent=1 // pred_check_branch
      %48 = sbr.rel (0) target = $region41
    $region40: #{tpu_custom_call.1} parent=1 // pred_region
      %50 = dma.done [#allocation4], 16384
    $region41: #{tpu_custom_call.1} parent=1 // pred_fallthru
      _
    %v52 = vld [vmem:[%s0] sm:$0xff]
    %v53 = vld [vmem:[%s0 + $0x8] sm:$0xff]
    %v54 = vld [vmem:[%s0 + $0x10] sm:$0xff]
    %v55 = vld [vmem:[%s0 + $0x18] sm:$0xff]
    %v56 = vpack.c.bf16 %v53, %v52
    %v57 = vpack.c.bf16 %v55, %v54
    %v58 = vld [vmem:[%s1] sm:$0xff]
    %v59 = vld [vmem:[%s1 + $0x8] sm:$0xff]
    %v60 = vld [vmem:[%s1 + $0x10] sm:$0xff]
    %v61 = vld [vmem:[%s1 + $0x18] sm:$0xff]
    %v62 = vpack.c.bf16 %v59, %v58
    %v63 = vpack.c.bf16 %v61, %v60
    %v64 = vld [vmem:[%s2] sm:$0xff]
    %v65 = vld [vmem:[%s2 + $0x8] sm:$0xff]
    %v66 = vld [vmem:[%s3] sm:$0xff]
    %68 = vst [vmem:[#allocation1] ss:$4 sm:$0xff] %v66
    %v69 = vld.sshfl [vmem:[#allocation1] sm:$0xff pattern:$0x73625140]
    %v70 = vld.sshfl [vmem:[#allocation1 + $0x8] sm:$0xff pattern:$0x73625140]
    %v71 = vld.sshfl [vmem:[#allocation1 + $0x10] sm:$0xff pattern:$0x73625140]
    %v72 = vld.sshfl [vmem:[#allocation1 + $0x18] sm:$0xff pattern:$0x73625140]
    %vm73 = vcmask 31744
    %v75 = vsel %vm73, %v62, 0
    %v78 = vsel %vm73, %v63, 0
    %vm80 = vcmask 1041408
    %v81 = vsel %vm80, %v69, 0
    %v83 = vsel %vm80, %v70, 0
    %v85 = vsel %vm80, %v71, 0
    %v87 = vsel %vm80, %v72, 0
    %89 = vmatpush.bf16.msra.mxu0 0
    %90 = vmatpush.bf16.msra.mxu0 0
    %91 = vmatpush.bf16.msra.mxu0 0
    %92 = vmatpush.bf16.msra.mxu0 0
    %93 = vmatpush.bf16.msra.mxu0 0
    %94 = vmatpush.bf16.msra.mxu0 0
    %95 = vmatpush.bf16.msra.mxu0 0
    %96 = vmatpush.bf16.msra.mxu0 %v81
    %97 = vmatmul.bf16.gmra.mxu0 %v75
    %v98 = vpop.f32.mrf.mxu0
    %v99 = vadd.f32 0.0, %v98
    %v100 = vpop.f32.mrf.mxu0
    %v101 = vadd.f32 0.0, %v100
    %102 = vmatmul.bf16.gmra.mxu0 %v78
    %v103 = vpop.f32.mrf.mxu0
    %v104 = vadd.f32 0.0, %v103
    %v105 = vpop.f32.mrf.mxu0
    %v106 = vadd.f32 0.0, %v105
    %107 = vdwg.mxu0
    %108 = vmatpush.bf16.msra.mxu0 0
    %109 = vmatpush.bf16.msra.mxu0 0
    %110 = vmatpush.bf16.msra.mxu0 0
    %111 = vmatpush.bf16.msra.mxu0 0
    %112 = vmatpush.bf16.msra.mxu0 0
    %113 = vmatpush.bf16.msra.mxu0 0
    %114 = vmatpush.bf16.msra.mxu0 0
    %115 = vmatpush.bf16.msra.mxu0 %v83
    %116 = vmatmul.bf16.gmra.mxu0 %v75
    %v117 = vpop.f32.mrf.mxu0
    %v118 = vadd.f32 0.0, %v117
    %v119 = vpop.f32.mrf.mxu0
    %v120 = vadd.f32 0.0, %v119
    %121 = vmatmul.bf16.gmra.mxu0 %v78
    %v122 = vpop.f32.mrf.mxu0
    %v123 = vadd.f32 0.0, %v122
    %v124 = vpop.f32.mrf.mxu0
    %v125 = vadd.f32 0.0, %v124
    %126 = vdwg.mxu0
    %127 = vmatpush.bf16.msra.mxu0 0
    %128 = vmatpush.bf16.msra.mxu0 0
    %129 = vmatpush.bf16.msra.mxu0 0
    %130 = vmatpush.bf16.msra.mxu0 0
    %131 = vmatpush.bf16.msra.mxu0 0
    %132 = vmatpush.bf16.msra.mxu0 0
    %133 = vmatpush.bf16.msra.mxu0 0
    %134 = vmatpush.bf16.msra.mxu0 %v85
    %135 = vmatmul.bf16.gmra.mxu0 %v75
    %v136 = vpop.f32.mrf.mxu0
    %v137 = vadd.f32 0.0, %v136
    %v138 = vpop.f32.mrf.mxu0
    %v139 = vadd.f32 0.0, %v138
    %140 = vmatmul.bf16.gmra.mxu0 %v78
    %v141 = vpop.f32.mrf.mxu0
    %v142 = vadd.f32 0.0, %v141
    %v143 = vpop.f32.mrf.mxu0
    %v144 = vadd.f32 0.0, %v143
    %145 = vdwg.mxu0
    %146 = vmatpush.bf16.msra.mxu0 0
    %147 = vmatpush.bf16.msra.mxu0 0
    %148 = vmatpush.bf16.msra.mxu0 0
    %149 = vmatpush.bf16.msra.mxu0 0
    %150 = vmatpush.bf16.msra.mxu0 0
    %151 = vmatpush.bf16.msra.mxu0 0
    %152 = vmatpush.bf16.msra.mxu0 0
    %153 = vmatpush.bf16.msra.mxu0 %v87
    %154 = vmatmul.bf16.gmra.mxu0 %v75
    %v155 = vpop.f32.mrf.mxu0
    %v156 = vadd.f32 0.0, %v155
    %v157 = vpop.f32.mrf.mxu0
    %v158 = vadd.f32 0.0, %v157
    %159 = vmatmul.bf16.gmra.mxu0 %v78
    %v160 = vpop.f32.mrf.mxu0
    %v161 = vadd.f32 0.0, %v160
    %v162 = vpop.f32.mrf.mxu0
    %v163 = vadd.f32 0.0, %v162
    %164 = vdwg.mxu0
    %v167 = vunpack.c.l.b16 %v64
    %v168 = vunpack.c.h.b16 %v64
    %v169 = vunpack.c.l.b16 %v65
    %v170 = vunpack.c.h.b16 %v65
    %v171 = vpack.c.b16 %v167, %v167
    %v172 = vpack.c.b16 %v168, %v168
    %v173 = vpack.c.b16 %v169, %v169
    %v174 = vpack.c.b16 %v170, %v170
    %vm175 = vcmask 64512
    %v177 = vsel %vm175, %v56, 0
    %v180 = vsel %vm175, %v57, 0
    %vm182 = vcmask 1043456
    %v184 = vsel %vm182, %v171, 0
    %v187 = vsel %vm182, %v172, 0
    %v190 = vsel %vm182, %v173, 0
    %v193 = vsel %vm182, %v174, 0
    %195 = vmatpush.bf16.msra.mxu0 0
    %196 = vmatpush.bf16.msra.mxu0 0
    %197 = vmatpush.bf16.msra.mxu0 0
    %198 = vmatpush.bf16.msra.mxu0 0
    %199 = vmatpush.bf16.msra.mxu0 0
    %200 = vmatpush.bf16.msra.mxu0 0
    %201 = vmatpush.bf16.msra.mxu0 0
    %202 = vmatpush.bf16.msra.mxu0 %v184
    %203 = vmatmul.bf16.gmra.mxu0 %v177
    %v204 = vpop.f32.mrf.mxu0
    %v205 = vadd.f32 %v99, %v204
    %v206 = vpop.f32.mrf.mxu0
    %v207 = vadd.f32 %v101, %v206
    %208 = vmatmul.bf16.gmra.mxu0 %v180
    %v209 = vpop.f32.mrf.mxu0
    %v210 = vadd.f32 %v104, %v209
    %v211 = vpop.f32.mrf.mxu0
    %v212 = vadd.f32 %v106, %v211
    %213 = vdwg.mxu0
    %214 = vmatpush.bf16.msra.mxu0 0
    %215 = vmatpush.bf16.msra.mxu0 0
    %216 = vmatpush.bf16.msra.mxu0 0
    %217 = vmatpush.bf16.msra.mxu0 0
    %218 = vmatpush.bf16.msra.mxu0 0
    %219 = vmatpush.bf16.msra.mxu0 0
    %220 = vmatpush.bf16.msra.mxu0 0
    %221 = vmatpush.bf16.msra.mxu0 %v187
    %222 = vmatmul.bf16.gmra.mxu0 %v177
    %v223 = vpop.f32.mrf.mxu0
    %v224 = vadd.f32 %v118, %v223
    %v225 = vpop.f32.mrf.mxu0
    %v226 = vadd.f32 %v120, %v225
    %227 = vmatmul.bf16.gmra.mxu0 %v180
    %v228 = vpop.f32.mrf.mxu0
    %v229 = vadd.f32 %v123, %v228
    %v230 = vpop.f32.mrf.mxu0
    %v231 = vadd.f32 %v125, %v230
    %232 = vdwg.mxu0
    %233 = vmatpush.bf16.msra.mxu0 0
    %234 = vmatpush.bf16.msra.mxu0 0
    %235 = vmatpush.bf16.msra.mxu0 0
    %236 = vmatpush.bf16.msra.mxu0 0
    %237 = vmatpush.bf16.msra.mxu0 0
    %238 = vmatpush.bf16.msra.mxu0 0
    %239 = vmatpush.bf16.msra.mxu0 0
    %240 = vmatpush.bf16.msra.mxu0 %v190
    %241 = vmatmul.bf16.gmra.mxu0 %v177
    %v242 = vpop.f32.mrf.mxu0
    %v243 = vadd.f32 %v137, %v242
    %v244 = vpop.f32.mrf.mxu0
    %v245 = vadd.f32 %v139, %v244
    %246 = vmatmul.bf16.gmra.mxu0 %v180
    %v247 = vpop.f32.mrf.mxu0
    %v248 = vadd.f32 %v142, %v247
    %v249 = vpop.f32.mrf.mxu0
    %v250 = vadd.f32 %v144, %v249
    %251 = vdwg.mxu0
    %252 = vmatpush.bf16.msra.mxu0 0
    %253 = vmatpush.bf16.msra.mxu0 0
    %254 = vmatpush.bf16.msra.mxu0 0
    %255 = vmatpush.bf16.msra.mxu0 0
    %256 = vmatpush.bf16.msra.mxu0 0
    %257 = vmatpush.bf16.msra.mxu0 0
    %258 = vmatpush.bf16.msra.mxu0 0
    %259 = vmatpush.bf16.msra.mxu0 %v193
    %260 = vmatmul.bf16.gmra.mxu0 %v177
    %v261 = vpop.f32.mrf.mxu0
    %v262 = vadd.f32 %v156, %v261
    %v263 = vpop.f32.mrf.mxu0
    %v264 = vadd.f32 %v158, %v263
    %265 = vmatmul.bf16.gmra.mxu0 %v180
    %v266 = vpop.f32.mrf.mxu0
    %v267 = vadd.f32 %v161, %v266
    %v268 = vpop.f32.mrf.mxu0
    %v269 = vadd.f32 %v163, %v268
    %270 = vdwg.mxu0
    %v271 = vld [vmem:[%s4] sm:$0xf]
    %v273 = vperm.slane %v271, 0
    %v274 = vperm.slane %v271, 1
    %v275 = vperm.slane %v271, 2
    %v276 = vperm.slane %v271, 3
    %v281 = vadd.f32 %v205, %v273
    %v282 = vadd.f32 %v224, %v274
    %v283 = vadd.f32 %v243, %v275
    %v284 = vadd.f32 %v262, %v276
    %v285 = vadd.f32 %v207, %v273
    %v286 = vadd.f32 %v226, %v274
    %v287 = vadd.f32 %v245, %v275
    %v288 = vadd.f32 %v264, %v276
    %v289 = vadd.f32 %v210, %v273
    %v290 = vadd.f32 %v229, %v274
    %v291 = vadd.f32 %v248, %v275
    %v292 = vadd.f32 %v267, %v276
    %v293 = vadd.f32 %v212, %v273
    %v294 = vadd.f32 %v231, %v274
    %v295 = vadd.f32 %v250, %v275
    %v296 = vadd.f32 %v269, %v276
    %v297 = vmax.f32 %v281, 0.0
    %v298 = vmax.f32 %v282, 0.0
    %v299 = vmax.f32 %v283, 0.0
    %v300 = vmax.f32 %v284, 0.0
    %v301 = vmax.f32 %v285, 0.0
    %v302 = vmax.f32 %v286, 0.0
    %v303 = vmax.f32 %v287, 0.0
    %v304 = vmax.f32 %v288, 0.0
    %v305 = vmax.f32 %v289, 0.0
    %v306 = vmax.f32 %v290, 0.0
    %v307 = vmax.f32 %v291, 0.0
    %v308 = vmax.f32 %v292, 0.0
    %v309 = vmax.f32 %v293, 0.0
    %v310 = vmax.f32 %v294, 0.0
    %v311 = vmax.f32 %v295, 0.0
    %v312 = vmax.f32 %v296, 0.0
    %v313 = vpack.c.bf16 %v301, %v297
    %v314 = vpack.c.bf16 %v302, %v298
    %v315 = vpack.c.bf16 %v303, %v299
    %v316 = vpack.c.bf16 %v304, %v300
    %v317 = vpack.c.bf16 %v309, %v305
    %v318 = vpack.c.bf16 %v310, %v306
    %v319 = vpack.c.bf16 %v311, %v307
    %v320 = vpack.c.bf16 %v312, %v308
    %v321 = vld [vmem:[#allocation3] sm:$0xff]
    %v322 = vld [vmem:[#allocation3 + $0x8] sm:$0xff]
    %v323 = vld [vmem:[#allocation3 + $0x10] sm:$0xff]
    %v324 = vld [vmem:[#allocation3 + $0x18] sm:$0xff]
    %v325 = vld [vmem:[#allocation3 + $0x20] sm:$0xff]
    %v326 = vld [vmem:[#allocation3 + $0x28] sm:$0xff]
    %v327 = vld [vmem:[#allocation3 + $0x30] sm:$0xff]
    %v328 = vld [vmem:[#allocation3 + $0x38] sm:$0xff]
    %v329 = vld [vmem:[#allocation3 + $0x40] sm:$0xff]
    %v330 = vld [vmem:[#allocation3 + $0x48] sm:$0xff]
    %v331 = vld [vmem:[#allocation3 + $0x50] sm:$0xff]
    %v332 = vld [vmem:[#allocation3 + $0x58] sm:$0xff]
    %v333 = vld [vmem:[#allocation3 + $0x60] sm:$0xff]
    %v334 = vld [vmem:[#allocation3 + $0x68] sm:$0xff]
    %v335 = vld [vmem:[#allocation3 + $0x70] sm:$0xff]
    %v336 = vld [vmem:[#allocation3 + $0x78] sm:$0xff]
    %v337 = vld [vmem:[#allocation3 + $0x80] sm:$0xff]
    %v338 = vld [vmem:[#allocation3 + $0x88] sm:$0xff]
    %v339 = vld [vmem:[#allocation3 + $0x90] sm:$0xff]
    %v340 = vld [vmem:[#allocation3 + $0x98] sm:$0xff]
    %v341 = vld [vmem:[#allocation3 + $0xa0] sm:$0xff]
    %v342 = vld [vmem:[#allocation3 + $0xa8] sm:$0xff]
    %v343 = vld [vmem:[#allocation3 + $0xb0] sm:$0xff]
    %v344 = vld [vmem:[#allocation3 + $0xb8] sm:$0xff]
    %v345 = vld [vmem:[#allocation3 + $0xc0] sm:$0xff]
    %v346 = vld [vmem:[#allocation3 + $0xc8] sm:$0xff]
    %v347 = vld [vmem:[#allocation3 + $0xd0] sm:$0xff]
    %v348 = vld [vmem:[#allocation3 + $0xd8] sm:$0xff]
    %v349 = vld [vmem:[#allocation3 + $0xe0] sm:$0xff]
    %v350 = vld [vmem:[#allocation3 + $0xe8] sm:$0xff]
    %v351 = vld [vmem:[#allocation3 + $0xf0] sm:$0xff]
    %v352 = vld [vmem:[#allocation3 + $0xf8] sm:$0xff]
    %v353 = vld [vmem:[#allocation3 + $0x100] sm:$0xff]
    %v354 = vld [vmem:[#allocation3 + $0x108] sm:$0xff]
    %v355 = vld [vmem:[#allocation3 + $0x110] sm:$0xff]
    %v356 = vld [vmem:[#allocation3 + $0x118] sm:$0xff]
    %v357 = vld [vmem:[#allocation3 + $0x120] sm:$0xff]
    %v358 = vld [vmem:[#allocation3 + $0x128] sm:$0xff]
    %v359 = vld [vmem:[#allocation3 + $0x130] sm:$0xff]
    %v360 = vld [vmem:[#allocation3 + $0x138] sm:$0xff]
    %v361 = vld [vmem:[#allocation3 + $0x140] sm:$0xff]
    %v362 = vld [vmem:[#allocation3 + $0x148] sm:$0xff]
    %v363 = vld [vmem:[#allocation3 + $0x150] sm:$0xff]
    %v364 = vld [vmem:[#allocation3 + $0x158] sm:$0xff]
    %v365 = vld [vmem:[#allocation3 + $0x160] sm:$0xff]
    %v366 = vld [vmem:[#allocation3 + $0x168] sm:$0xff]
    %v367 = vld [vmem:[#allocation3 + $0x170] sm:$0xff]
    %v368 = vld [vmem:[#allocation3 + $0x178] sm:$0xff]
    %v369 = vld [vmem:[#allocation3 + $0x180] sm:$0xff]
    %v370 = vld [vmem:[#allocation3 + $0x188] sm:$0xff]
    %v371 = vld [vmem:[#allocation3 + $0x190] sm:$0xff]
    %v372 = vld [vmem:[#allocation3 + $0x198] sm:$0xff]
    %v373 = vld [vmem:[#allocation3 + $0x1a0] sm:$0xff]
    %v374 = vld [vmem:[#allocation3 + $0x1a8] sm:$0xff]
    %v375 = vld [vmem:[#allocation3 + $0x1b0] sm:$0xff]
    %v376 = vld [vmem:[#allocation3 + $0x1b8] sm:$0xff]
    %v377 = vld [vmem:[#allocation3 + $0x1c0] sm:$0xff]
    %v378 = vld [vmem:[#allocation3 + $0x1c8] sm:$0xff]
    %v379 = vld [vmem:[#allocation3 + $0x1d0] sm:$0xff]
    %v380 = vld [vmem:[#allocation3 + $0x1d8] sm:$0xff]
    %v381 = vld [vmem:[#allocation3 + $0x1e0] sm:$0xff]
    %v382 = vld [vmem:[#allocation3 + $0x1e8] sm:$0xff]
    %v383 = vld [vmem:[#allocation3 + $0x1f0] sm:$0xff]
    %v384 = vld [vmem:[#allocation3 + $0x1f8] sm:$0xff]
    %v385 = vld [vmem:[#allocation3 + $0x200] sm:$0xff]
    %v386 = vld [vmem:[#allocation3 + $0x208] sm:$0xff]
    %v387 = vld [vmem:[#allocation3 + $0x210] sm:$0xff]
    %v388 = vld [vmem:[#allocation3 + $0x218] sm:$0xff]
    %v389 = vld [vmem:[#allocation3 + $0x220] sm:$0xff]
    %v390 = vld [vmem:[#allocation3 + $0x228] sm:$0xff]
    %v391 = vld [vmem:[#allocation3 + $0x230] sm:$0xff]
    %v392 = vld [vmem:[#allocation3 + $0x238] sm:$0xff]
    %v393 = vld [vmem:[#allocation3 + $0x240] sm:$0xff]
    %v394 = vld [vmem:[#allocation3 + $0x248] sm:$0xff]
    %v395 = vld [vmem:[#allocation3 + $0x250] sm:$0xff]
    %v396 = vld [vmem:[#allocation3 + $0x258] sm:$0xff]
    %v397 = vld [vmem:[#allocation3 + $0x260] sm:$0xff]
    %v398 = vld [vmem:[#allocation3 + $0x268] sm:$0xff]
    %v399 = vld [vmem:[#allocation3 + $0x270] sm:$0xff]
    %v400 = vld [vmem:[#allocation3 + $0x278] sm:$0xff]
    %v401 = vld [vmem:[#allocation3 + $0x280] sm:$0xff]
    %v402 = vld [vmem:[#allocation3 + $0x288] sm:$0xff]
    %v403 = vld [vmem:[#allocation3 + $0x290] sm:$0xff]
    %v404 = vld [vmem:[#allocation3 + $0x298] sm:$0xff]
    %v405 = vld [vmem:[#allocation3 + $0x2a0] sm:$0xff]
    %v406 = vld [vmem:[#allocation3 + $0x2a8] sm:$0xff]
    %v407 = vld [vmem:[#allocation3 + $0x2b0] sm:$0xff]
    %v408 = vld [vmem:[#allocation3 + $0x2b8] sm:$0xff]
    %v409 = vld [vmem:[#allocation3 + $0x2c0] sm:$0xff]
    %v410 = vld [vmem:[#allocation3 + $0x2c8] sm:$0xff]
    %v411 = vld [vmem:[#allocation3 + $0x2d0] sm:$0xff]
    %v412 = vld [vmem:[#allocation3 + $0x2d8] sm:$0xff]
    %v413 = vld [vmem:[#allocation3 + $0x2e0] sm:$0xff]
    %v414 = vld [vmem:[#allocation3 + $0x2e8] sm:$0xff]
    %v415 = vld [vmem:[#allocation3 + $0x2f0] sm:$0xff]
    %v416 = vld [vmem:[#allocation3 + $0x2f8] sm:$0xff]
    %v417 = vld [vmem:[#allocation3 + $0x300] sm:$0xff]
    %v418 = vld [vmem:[#allocation3 + $0x308] sm:$0xff]
    %v419 = vld [vmem:[#allocation3 + $0x310] sm:$0xff]
    %v420 = vld [vmem:[#allocation3 + $0x318] sm:$0xff]
    %v421 = vld [vmem:[#allocation3 + $0x320] sm:$0xff]
    %v422 = vld [vmem:[#allocation3 + $0x328] sm:$0xff]
    %v423 = vld [vmem:[#allocation3 + $0x330] sm:$0xff]
    %v424 = vld [vmem:[#allocation3 + $0x338] sm:$0xff]
    %v425 = vld [vmem:[#allocation3 + $0x340] sm:$0xff]
    %v426 = vld [vmem:[#allocation3 + $0x348] sm:$0xff]
    %v427 = vld [vmem:[#allocation3 + $0x350] sm:$0xff]
    %v428 = vld [vmem:[#allocation3 + $0x358] sm:$0xff]
    %v429 = vld [vmem:[#allocation3 + $0x360] sm:$0xff]
    %v430 = vld [vmem:[#allocation3 + $0x368] sm:$0xff]
    %v431 = vld [vmem:[#allocation3 + $0x370] sm:$0xff]
    %v432 = vld [vmem:[#allocation3 + $0x378] sm:$0xff]
    %v433 = vld [vmem:[#allocation3 + $0x380] sm:$0xff]
    %v434 = vld [vmem:[#allocation3 + $0x388] sm:$0xff]
    %v435 = vld [vmem:[#allocation3 + $0x390] sm:$0xff]
    %v436 = vld [vmem:[#allocation3 + $0x398] sm:$0xff]
    %v437 = vld [vmem:[#allocation3 + $0x3a0] sm:$0xff]
    %v438 = vld [vmem:[#allocation3 + $0x3a8] sm:$0xff]
    %v439 = vld [vmem:[#allocation3 + $0x3b0] sm:$0xff]
    %v440 = vld [vmem:[#allocation3 + $0x3b8] sm:$0xff]
    %v441 = vld [vmem:[#allocation3 + $0x3c0] sm:$0xff]
    %v442 = vld [vmem:[#allocation3 + $0x3c8] sm:$0xff]
    %v443 = vld [vmem:[#allocation3 + $0x3d0] sm:$0xff]
    %v444 = vld [vmem:[#allocation3 + $0x3d8] sm:$0xff]
    %v445 = vld [vmem:[#allocation3 + $0x3e0] sm:$0xff]
    %v446 = vld [vmem:[#allocation3 + $0x3e8] sm:$0xff]
    %v447 = vld [vmem:[#allocation3 + $0x3f0] sm:$0xff]
    %v448 = vld [vmem:[#allocation3 + $0x3f8] sm:$0xff]
    %v449 = vld [vmem:[%s6] sm:$0xf]
    %v451 = vperm.slane %v449, 0
    %v452 = vperm.slane %v449, 1
    %v453 = vperm.slane %v449, 2
    %v454 = vperm.slane %v449, 3
    %v587 = vunpack.c.l.b16 %v321
    %v588 = vunpack.c.h.b16 %v321
    %v589 = vunpack.c.l.b16 %v322
    %v590 = vunpack.c.h.b16 %v322
    %v591 = vunpack.c.l.b16 %v323
    %v592 = vunpack.c.h.b16 %v323
    %v593 = vunpack.c.l.b16 %v324
    %v594 = vunpack.c.h.b16 %v324
    %v595 = vunpack.c.l.b16 %v325
    %v596 = vunpack.c.h.b16 %v325
    %v597 = vunpack.c.l.b16 %v326
    %v598 = vunpack.c.h.b16 %v326
    %v599 = vunpack.c.l.b16 %v327
    %v600 = vunpack.c.h.b16 %v327
    %v601 = vunpack.c.l.b16 %v328
    %v602 = vunpack.c.h.b16 %v328
    %v603 = vunpack.c.l.b16 %v329
    %v604 = vunpack.c.h.b16 %v329
    %v605 = vunpack.c.l.b16 %v330
    %v606 = vunpack.c.h.b16 %v330
    %v607 = vunpack.c.l.b16 %v331
    %v608 = vunpack.c.h.b16 %v331
    %v609 = vunpack.c.l.b16 %v332
    %v610 = vunpack.c.h.b16 %v332
    %v611 = vunpack.c.l.b16 %v333
    %v612 = vunpack.c.h.b16 %v333
    %v613 = vunpack.c.l.b16 %v334
    %v614 = vunpack.c.h.b16 %v334
    %v615 = vunpack.c.l.b16 %v335
    %v616 = vunpack.c.h.b16 %v335
    %v617 = vunpack.c.l.b16 %v336
    %v618 = vunpack.c.h.b16 %v336
    %v619 = vunpack.c.l.b16 %v337
    %v620 = vunpack.c.h.b16 %v337
    %v621 = vunpack.c.l.b16 %v338
    %v622 = vunpack.c.h.b16 %v338
    %v623 = vunpack.c.l.b16 %v339
    %v624 = vunpack.c.h.b16 %v339
    %v625 = vunpack.c.l.b16 %v340
    %v626 = vunpack.c.h.b16 %v340
    %v627 = vunpack.c.l.b16 %v341
    %v628 = vunpack.c.h.b16 %v341
    %v629 = vunpack.c.l.b16 %v342
    %v630 = vunpack.c.h.b16 %v342
    %v631 = vunpack.c.l.b16 %v343
    %v632 = vunpack.c.h.b16 %v343
    %v633 = vunpack.c.l.b16 %v344
    %v634 = vunpack.c.h.b16 %v344
    %v635 = vunpack.c.l.b16 %v345
    %v636 = vunpack.c.h.b16 %v345
    %v637 = vunpack.c.l.b16 %v346
    %v638 = vunpack.c.h.b16 %v346
    %v639 = vunpack.c.l.b16 %v347
    %v640 = vunpack.c.h.b16 %v347
    %v641 = vunpack.c.l.b16 %v348
    %v642 = vunpack.c.h.b16 %v348
    %v643 = vunpack.c.l.b16 %v349
    %v644 = vunpack.c.h.b16 %v349
    %v645 = vunpack.c.l.b16 %v350
    %v646 = vunpack.c.h.b16 %v350
    %v647 = vunpack.c.l.b16 %v351
    %v648 = vunpack.c.h.b16 %v351
    %v649 = vunpack.c.l.b16 %v352
    %v650 = vunpack.c.h.b16 %v352
    %v651 = vunpack.c.l.b16 %v353
    %v652 = vunpack.c.h.b16 %v353
    %v653 = vunpack.c.l.b16 %v354
    %v654 = vunpack.c.h.b16 %v354
    %v655 = vunpack.c.l.b16 %v355
    %v656 = vunpack.c.h.b16 %v355
    %v657 = vunpack.c.l.b16 %v356
    %v658 = vunpack.c.h.b16 %v356
    %v659 = vunpack.c.l.b16 %v357
    %v660 = vunpack.c.h.b16 %v357
    %v661 = vunpack.c.l.b16 %v358
    %v662 = vunpack.c.h.b16 %v358
    %v663 = vunpack.c.l.b16 %v359
    %v664 = vunpack.c.h.b16 %v359
    %v665 = vunpack.c.l.b16 %v360
    %v666 = vunpack.c.h.b16 %v360
    %v667 = vunpack.c.l.b16 %v361
    %v668 = vunpack.c.h.b16 %v361
    %v669 = vunpack.c.l.b16 %v362
    %v670 = vunpack.c.h.b16 %v362
    %v671 = vunpack.c.l.b16 %v363
    %v672 = vunpack.c.h.b16 %v363
    %v673 = vunpack.c.l.b16 %v364
    %v674 = vunpack.c.h.b16 %v364
    %v675 = vunpack.c.l.b16 %v365
    %v676 = vunpack.c.h.b16 %v365
    %v677 = vunpack.c.l.b16 %v366
    %v678 = vunpack.c.h.b16 %v366
    %v679 = vunpack.c.l.b16 %v367
    %v680 = vunpack.c.h.b16 %v367
    %v681 = vunpack.c.l.b16 %v368
    %v682 = vunpack.c.h.b16 %v368
    %v683 = vunpack.c.l.b16 %v369
    %v684 = vunpack.c.h.b16 %v369
    %v685 = vunpack.c.l.b16 %v370
    %v686 = vunpack.c.h.b16 %v370
    %v687 = vunpack.c.l.b16 %v371
    %v688 = vunpack.c.h.b16 %v371
    %v689 = vunpack.c.l.b16 %v372
    %v690 = vunpack.c.h.b16 %v372
    %v691 = vunpack.c.l.b16 %v373
    %v692 = vunpack.c.h.b16 %v373
    %v693 = vunpack.c.l.b16 %v374
    %v694 = vunpack.c.h.b16 %v374
    %v695 = vunpack.c.l.b16 %v375
    %v696 = vunpack.c.h.b16 %v375
    %v697 = vunpack.c.l.b16 %v376
    %v698 = vunpack.c.h.b16 %v376
    %v699 = vunpack.c.l.b16 %v377
    %v700 = vunpack.c.h.b16 %v377
    %v701 = vunpack.c.l.b16 %v378
    %v702 = vunpack.c.h.b16 %v378
    %v703 = vunpack.c.l.b16 %v379
    %v704 = vunpack.c.h.b16 %v379
    %v705 = vunpack.c.l.b16 %v380
    %v706 = vunpack.c.h.b16 %v380
    %v707 = vunpack.c.l.b16 %v381
    %v708 = vunpack.c.h.b16 %v381
    %v709 = vunpack.c.l.b16 %v382
    %v710 = vunpack.c.h.b16 %v382
    %v711 = vunpack.c.l.b16 %v383
    %v712 = vunpack.c.h.b16 %v383
    %v713 = vunpack.c.l.b16 %v384
    %v714 = vunpack.c.h.b16 %v384
    %v715 = vunpack.c.l.b16 %v385
    %v716 = vunpack.c.h.b16 %v385
    %v717 = vunpack.c.l.b16 %v386
    %v718 = vunpack.c.h.b16 %v386
    %v719 = vunpack.c.l.b16 %v387
    %v720 = vunpack.c.h.b16 %v387
    %v721 = vunpack.c.l.b16 %v388
    %v722 = vunpack.c.h.b16 %v388
    %v723 = vunpack.c.l.b16 %v389
    %v724 = vunpack.c.h.b16 %v389
    %v725 = vunpack.c.l.b16 %v390
    %v726 = vunpack.c.h.b16 %v390
    %v727 = vunpack.c.l.b16 %v391
    %v728 = vunpack.c.h.b16 %v391
    %v729 = vunpack.c.l.b16 %v392
    %v730 = vunpack.c.h.b16 %v392
    %v731 = vunpack.c.l.b16 %v393
    %v732 = vunpack.c.h.b16 %v393
    %v733 = vunpack.c.l.b16 %v394
    %v734 = vunpack.c.h.b16 %v394
    %v735 = vunpack.c.l.b16 %v395
    %v736 = vunpack.c.h.b16 %v395
    %v737 = vunpack.c.l.b16 %v396
    %v738 = vunpack.c.h.b16 %v396
    %v739 = vunpack.c.l.b16 %v397
    %v740 = vunpack.c.h.b16 %v397
    %v741 = vunpack.c.l.b16 %v398
    %v742 = vunpack.c.h.b16 %v398
    %v743 = vunpack.c.l.b16 %v399
    %v744 = vunpack.c.h.b16 %v399
    %v745 = vunpack.c.l.b16 %v400
    %v746 = vunpack.c.h.b16 %v400
    %v747 = vunpack.c.l.b16 %v401
    %v748 = vunpack.c.h.b16 %v401
    %v749 = vunpack.c.l.b16 %v402
    %v750 = vunpack.c.h.b16 %v402
    %v751 = vunpack.c.l.b16 %v403
    %v752 = vunpack.c.h.b16 %v403
    %v753 = vunpack.c.l.b16 %v404
    %v754 = vunpack.c.h.b16 %v404
    %v755 = vunpack.c.l.b16 %v405
    %v756 = vunpack.c.h.b16 %v405
    %v757 = vunpack.c.l.b16 %v406
    %v758 = vunpack.c.h.b16 %v406
    %v759 = vunpack.c.l.b16 %v407
    %v760 = vunpack.c.h.b16 %v407
    %v761 = vunpack.c.l.b16 %v408
    %v762 = vunpack.c.h.b16 %v408
    %v763 = vunpack.c.l.b16 %v409
    %v764 = vunpack.c.h.b16 %v409
    %v765 = vunpack.c.l.b16 %v410
    %v766 = vunpack.c.h.b16 %v410
    %v767 = vunpack.c.l.b16 %v411
    %v768 = vunpack.c.h.b16 %v411
    %v769 = vunpack.c.l.b16 %v412
    %v770 = vunpack.c.h.b16 %v412
    %v771 = vunpack.c.l.b16 %v413
    %v772 = vunpack.c.h.b16 %v413
    %v773 = vunpack.c.l.b16 %v414
    %v774 = vunpack.c.h.b16 %v414
    %v775 = vunpack.c.l.b16 %v415
    %v776 = vunpack.c.h.b16 %v415
    %v777 = vunpack.c.l.b16 %v416
    %v778 = vunpack.c.h.b16 %v416
    %v779 = vunpack.c.l.b16 %v417
    %v780 = vunpack.c.h.b16 %v417
    %v781 = vunpack.c.l.b16 %v418
    %v782 = vunpack.c.h.b16 %v418
    %v783 = vunpack.c.l.b16 %v419
    %v784 = vunpack.c.h.b16 %v419
    %v785 = vunpack.c.l.b16 %v420
    %v786 = vunpack.c.h.b16 %v420
    %v787 = vunpack.c.l.b16 %v421
    %v788 = vunpack.c.h.b16 %v421
    %v789 = vunpack.c.l.b16 %v422
    %v790 = vunpack.c.h.b16 %v422
    %v791 = vunpack.c.l.b16 %v423
    %v792 = vunpack.c.h.b16 %v423
    %v793 = vunpack.c.l.b16 %v424
    %v794 = vunpack.c.h.b16 %v424
    %v795 = vunpack.c.l.b16 %v425
    %v796 = vunpack.c.h.b16 %v425
    %v797 = vunpack.c.l.b16 %v426
    %v798 = vunpack.c.h.b16 %v426
    %v799 = vunpack.c.l.b16 %v427
    %v800 = vunpack.c.h.b16 %v427
    %v801 = vunpack.c.l.b16 %v428
    %v802 = vunpack.c.h.b16 %v428
    %v803 = vunpack.c.l.b16 %v429
    %v804 = vunpack.c.h.b16 %v429
    %v805 = vunpack.c.l.b16 %v430
    %v806 = vunpack.c.h.b16 %v430
    %v807 = vunpack.c.l.b16 %v431
    %v808 = vunpack.c.h.b16 %v431
    %v809 = vunpack.c.l.b16 %v432
    %v810 = vunpack.c.h.b16 %v432
    %v811 = vunpack.c.l.b16 %v433
    %v812 = vunpack.c.h.b16 %v433
    %v813 = vunpack.c.l.b16 %v434
    %v814 = vunpack.c.h.b16 %v434
    %v815 = vunpack.c.l.b16 %v435
    %v816 = vunpack.c.h.b16 %v435
    %v817 = vunpack.c.l.b16 %v436
    %v818 = vunpack.c.h.b16 %v436
    %v819 = vunpack.c.l.b16 %v437
    %v820 = vunpack.c.h.b16 %v437
    %v821 = vunpack.c.l.b16 %v438
    %v822 = vunpack.c.h.b16 %v438
    %v823 = vunpack.c.l.b16 %v439
    %v824 = vunpack.c.h.b16 %v439
    %v825 = vunpack.c.l.b16 %v440
    %v826 = vunpack.c.h.b16 %v440
    %v827 = vunpack.c.l.b16 %v441
    %v828 = vunpack.c.h.b16 %v441
    %v829 = vunpack.c.l.b16 %v442
    %v830 = vunpack.c.h.b16 %v442
    %v831 = vunpack.c.l.b16 %v443
    %v832 = vunpack.c.h.b16 %v443
    %v833 = vunpack.c.l.b16 %v444
    %v834 = vunpack.c.h.b16 %v444
    %v835 = vunpack.c.l.b16 %v445
    %v836 = vunpack.c.h.b16 %v445
    %v837 = vunpack.c.l.b16 %v446
    %v838 = vunpack.c.h.b16 %v446
    %v839 = vunpack.c.l.b16 %v447
    %v840 = vunpack.c.h.b16 %v447
    %v841 = vunpack.c.l.b16 %v448
    %v842 = vunpack.c.h.b16 %v448
    %v843 = vpack.c.b16 %v591, %v587
    %v844 = vpack.c.b16 %v592, %v588
    %v845 = vpack.c.b16 %v593, %v589
    %v846 = vpack.c.b16 %v594, %v590
    %v847 = vpack.c.b16 %v599, %v595
    %v848 = vpack.c.b16 %v600, %v596
    %v849 = vpack.c.b16 %v601, %v597
    %v850 = vpack.c.b16 %v602, %v598
    %v851 = vpack.c.b16 %v607, %v603
    %v852 = vpack.c.b16 %v608, %v604
    %v853 = vpack.c.b16 %v609, %v605
    %v854 = vpack.c.b16 %v610, %v606
    %v855 = vpack.c.b16 %v615, %v611
    %v856 = vpack.c.b16 %v616, %v612
    %v857 = vpack.c.b16 %v617, %v613
    %v858 = vpack.c.b16 %v618, %v614
    %v859 = vpack.c.b16 %v623, %v619
    %v860 = vpack.c.b16 %v624, %v620
    %v861 = vpack.c.b16 %v625, %v621
    %v862 = vpack.c.b16 %v626, %v622
    %v863 = vpack.c.b16 %v631, %v627
    %v864 = vpack.c.b16 %v632, %v628
    %v865 = vpack.c.b16 %v633, %v629
    %v866 = vpack.c.b16 %v634, %v630
    %v867 = vpack.c.b16 %v639, %v635
    %v868 = vpack.c.b16 %v640, %v636
    %v869 = vpack.c.b16 %v641, %v637
    %v870 = vpack.c.b16 %v642, %v638
    %v871 = vpack.c.b16 %v647, %v643
    %v872 = vpack.c.b16 %v648, %v644
    %v873 = vpack.c.b16 %v649, %v645
    %v874 = vpack.c.b16 %v650, %v646
    %v875 = vpack.c.b16 %v655, %v651
    %v876 = vpack.c.b16 %v656, %v652
    %v877 = vpack.c.b16 %v657, %v653
    %v878 = vpack.c.b16 %v658, %v654
    %v879 = vpack.c.b16 %v663, %v659
    %v880 = vpack.c.b16 %v664, %v660
    %v881 = vpack.c.b16 %v665, %v661
    %v882 = vpack.c.b16 %v666, %v662
    %v883 = vpack.c.b16 %v671, %v667
    %v884 = vpack.c.b16 %v672, %v668
    %v885 = vpack.c.b16 %v673, %v669
    %v886 = vpack.c.b16 %v674, %v670
    %v887 = vpack.c.b16 %v679, %v675
    %v888 = vpack.c.b16 %v680, %v676
    %v889 = vpack.c.b16 %v681, %v677
    %v890 = vpack.c.b16 %v682, %v678
    %v891 = vpack.c.b16 %v687, %v683
    %v892 = vpack.c.b16 %v688, %v684
    %v893 = vpack.c.b16 %v689, %v685
    %v894 = vpack.c.b16 %v690, %v686
    %v895 = vpack.c.b16 %v695, %v691
    %v896 = vpack.c.b16 %v696, %v692
    %v897 = vpack.c.b16 %v697, %v693
    %v898 = vpack.c.b16 %v698, %v694
    %v899 = vpack.c.b16 %v703, %v699
    %v900 = vpack.c.b16 %v704, %v700
    %v901 = vpack.c.b16 %v705, %v701
    %v902 = vpack.c.b16 %v706, %v702
    %v903 = vpack.c.b16 %v711, %v707
    %v904 = vpack.c.b16 %v712, %v708
    %v905 = vpack.c.b16 %v713, %v709
    %v906 = vpack.c.b16 %v714, %v710
    %v907 = vpack.c.b16 %v719, %v715
    %v908 = vpack.c.b16 %v720, %v716
    %v909 = vpack.c.b16 %v721, %v717
    %v910 = vpack.c.b16 %v722, %v718
    %v911 = vpack.c.b16 %v727, %v723
    %v912 = vpack.c.b16 %v728, %v724
    %v913 = vpack.c.b16 %v729, %v725
    %v914 = vpack.c.b16 %v730, %v726
    %v915 = vpack.c.b16 %v735, %v731
    %v916 = vpack.c.b16 %v736, %v732
    %v917 = vpack.c.b16 %v737, %v733
    %v918 = vpack.c.b16 %v738, %v734
    %v919 = vpack.c.b16 %v743, %v739
    %v920 = vpack.c.b16 %v744, %v740
    %v921 = vpack.c.b16 %v745, %v741
    %v922 = vpack.c.b16 %v746, %v742
    %v923 = vpack.c.b16 %v751, %v747
    %v924 = vpack.c.b16 %v752, %v748
    %v925 = vpack.c.b16 %v753, %v749
    %v926 = vpack.c.b16 %v754, %v750
    %v927 = vpack.c.b16 %v759, %v755
    %v928 = vpack.c.b16 %v760, %v756
    %v929 = vpack.c.b16 %v761, %v757
    %v930 = vpack.c.b16 %v762, %v758
    %v931 = vpack.c.b16 %v767, %v763
    %v932 = vpack.c.b16 %v768, %v764
    %v933 = vpack.c.b16 %v769, %v765
    %v934 = vpack.c.b16 %v770, %v766
    %v935 = vpack.c.b16 %v775, %v771
    %v936 = vpack.c.b16 %v776, %v772
    %v937 = vpack.c.b16 %v777, %v773
    %v938 = vpack.c.b16 %v778, %v774
    %v939 = vpack.c.b16 %v783, %v779
    %v940 = vpack.c.b16 %v784, %v780
    %v941 = vpack.c.b16 %v785, %v781
    %v942 = vpack.c.b16 %v786, %v782
    %v943 = vpack.c.b16 %v791, %v787
    %v944 = vpack.c.b16 %v792, %v788
    %v945 = vpack.c.b16 %v793, %v789
    %v946 = vpack.c.b16 %v794, %v790
    %v947 = vpack.c.b16 %v799, %v795
    %v948 = vpack.c.b16 %v800, %v796
    %v949 = vpack.c.b16 %v801, %v797
    %v950 = vpack.c.b16 %v802, %v798
    %v951 = vpack.c.b16 %v807, %v803
    %v952 = vpack.c.b16 %v808, %v804
    %v953 = vpack.c.b16 %v809, %v805
    %v954 = vpack.c.b16 %v810, %v806
    %v955 = vpack.c.b16 %v815, %v811
    %v956 = vpack.c.b16 %v816, %v812
    %v957 = vpack.c.b16 %v817, %v813
    %v958 = vpack.c.b16 %v818, %v814
    %v959 = vpack.c.b16 %v823, %v819
    %v960 = vpack.c.b16 %v824, %v820
    %v961 = vpack.c.b16 %v825, %v821
    %v962 = vpack.c.b16 %v826, %v822
    %v963 = vpack.c.b16 %v831, %v827
    %v964 = vpack.c.b16 %v832, %v828
    %v965 = vpack.c.b16 %v833, %v829
    %v966 = vpack.c.b16 %v834, %v830
    %v967 = vpack.c.b16 %v839, %v835
    %v968 = vpack.c.b16 %v840, %v836
    %v969 = vpack.c.b16 %v841, %v837
    %v970 = vpack.c.b16 %v842, %v838
    %1099 = vmatpush.bf16.msra.mxu0 %v871
    %1100 = vmatpush.bf16.msra.mxu0 %v867
    %1101 = vmatpush.bf16.msra.mxu0 %v863
    %1102 = vmatpush.bf16.msra.mxu0 %v859
    %1103 = vmatpush.bf16.msra.mxu0 %v855
    %1104 = vmatpush.bf16.msra.mxu0 %v851
    %1105 = vmatpush.bf16.msra.mxu0 %v847
    %1106 = vmatpush.bf16.msra.mxu0 %v843
    %1107 = vmatmul.bf16.gmra.mxu0 %v313
    %v1108 = vpop.f32.mrf.mxu0
    %v1109 = vadd.f32 %v451, %v1108
    %v1110 = vpop.f32.mrf.mxu0
    %v1111 = vadd.f32 %v451, %v1110
    %1112 = vmatmul.bf16.gmra.mxu0 %v317
    %v1113 = vpop.f32.mrf.mxu0
    %v1114 = vadd.f32 %v451, %v1113
    %v1115 = vpop.f32.mrf.mxu0
    %v1116 = vadd.f32 %v451, %v1115
    %1117 = vdwg.mxu0
    %1118 = vmatpush.bf16.msra.mxu0 %v903
    %1119 = vmatpush.bf16.msra.mxu0 %v899
    %1120 = vmatpush.bf16.msra.mxu0 %v895
    %1121 = vmatpush.bf16.msra.mxu0 %v891
    %1122 = vmatpush.bf16.msra.mxu0 %v887
    %1123 = vmatpush.bf16.msra.mxu0 %v883
    %1124 = vmatpush.bf16.msra.mxu0 %v879
    %1125 = vmatpush.bf16.msra.mxu0 %v875
    %1126 = vmatmul.bf16.gmra.mxu0 %v314
    %v1127 = vpop.f32.mrf.mxu0
    %v1128 = vadd.f32 %v1109, %v1127
    %v1129 = vpop.f32.mrf.mxu0
    %v1130 = vadd.f32 %v1111, %v1129
    %1131 = vmatmul.bf16.gmra.mxu0 %v318
    %v1132 = vpop.f32.mrf.mxu0
    %v1133 = vadd.f32 %v1114, %v1132
    %v1134 = vpop.f32.mrf.mxu0
    %v1135 = vadd.f32 %v1116, %v1134
    %1136 = vdwg.mxu0
    %1137 = vmatpush.bf16.msra.mxu0 %v935
    %1138 = vmatpush.bf16.msra.mxu0 %v931
    %1139 = vmatpush.bf16.msra.mxu0 %v927
    %1140 = vmatpush.bf16.msra.mxu0 %v923
    %1141 = vmatpush.bf16.msra.mxu0 %v919
    %1142 = vmatpush.bf16.msra.mxu0 %v915
    %1143 = vmatpush.bf16.msra.mxu0 %v911
    %1144 = vmatpush.bf16.msra.mxu0 %v907
    %1145 = vmatmul.bf16.gmra.mxu0 %v315
    %v1146 = vpop.f32.mrf.mxu0
    %v1147 = vadd.f32 %v1128, %v1146
    %v1148 = vpop.f32.mrf.mxu0
    %v1149 = vadd.f32 %v1130, %v1148
    %1150 = vmatmul.bf16.gmra.mxu0 %v319
    %v1151 = vpop.f32.mrf.mxu0
    %v1152 = vadd.f32 %v1133, %v1151
    %v1153 = vpop.f32.mrf.mxu0
    %v1154 = vadd.f32 %v1135, %v1153
    %1155 = vdwg.mxu0
    %1156 = vmatpush.bf16.msra.mxu0 %v967
    %1157 = vmatpush.bf16.msra.mxu0 %v963
    %1158 = vmatpush.bf16.msra.mxu0 %v959
    %1159 = vmatpush.bf16.msra.mxu0 %v955
    %1160 = vmatpush.bf16.msra.mxu0 %v951
    %1161 = vmatpush.bf16.msra.mxu0 %v947
    %1162 = vmatpush.bf16.msra.mxu0 %v943
    %1163 = vmatpush.bf16.msra.mxu0 %v939
    %1164 = vmatmul.bf16.gmra.mxu0 %v316
    %v1165 = vpop.f32.mrf.mxu0
    %v1166 = vadd.f32 %v1147, %v1165
    %v1167 = vpop.f32.mrf.mxu0
    %v1168 = vadd.f32 %v1149, %v1167
    %1169 = vmatmul.bf16.gmra.mxu0 %v320
    %v1170 = vpop.f32.mrf.mxu0
    %v1171 = vadd.f32 %v1152, %v1170
    %v1172 = vpop.f32.mrf.mxu0
    %v1173 = vadd.f32 %v1154, %v1172
    %1174 = vdwg.mxu0
    %1175 = vmatpush.bf16.msra.mxu0 %v872
    %1176 = vmatpush.bf16.msra.mxu0 %v868
    %1177 = vmatpush.bf16.msra.mxu0 %v864
    %1178 = vmatpush.bf16.msra.mxu0 %v860
    %1179 = vmatpush.bf16.msra.mxu0 %v856
    %1180 = vmatpush.bf16.msra.mxu0 %v852
    %1181 = vmatpush.bf16.msra.mxu0 %v848
    %1182 = vmatpush.bf16.msra.mxu0 %v844
    %1183 = vmatmul.bf16.gmra.mxu0 %v313
    %v1184 = vpop.f32.mrf.mxu0
    %v1185 = vadd.f32 %v452, %v1184
    %v1186 = vpop.f32.mrf.mxu0
    %v1187 = vadd.f32 %v452, %v1186
    %1188 = vmatmul.bf16.gmra.mxu0 %v317
    %v1189 = vpop.f32.mrf.mxu0
    %v1190 = vadd.f32 %v452, %v1189
    %v1191 = vpop.f32.mrf.mxu0
    %v1192 = vadd.f32 %v452, %v1191
    %1193 = vdwg.mxu0
    %1194 = vmatpush.bf16.msra.mxu0 %v904
    %1195 = vmatpush.bf16.msra.mxu0 %v900
    %1196 = vmatpush.bf16.msra.mxu0 %v896
    %1197 = vmatpush.bf16.msra.mxu0 %v892
    %1198 = vmatpush.bf16.msra.mxu0 %v888
    %1199 = vmatpush.bf16.msra.mxu0 %v884
    %1200 = vmatpush.bf16.msra.mxu0 %v880
    %1201 = vmatpush.bf16.msra.mxu0 %v876
    %1202 = vmatmul.bf16.gmra.mxu0 %v314
    %v1203 = vpop.f32.mrf.mxu0
    %v1204 = vadd.f32 %v1185, %v1203
    %v1205 = vpop.f32.mrf.mxu0
    %v1206 = vadd.f32 %v1187, %v1205
    %1207 = vmatmul.bf16.gmra.mxu0 %v318
    %v1208 = vpop.f32.mrf.mxu0
    %v1209 = vadd.f32 %v1190, %v1208
    %v1210 = vpop.f32.mrf.mxu0
    %v1211 = vadd.f32 %v1192, %v1210
    %1212 = vdwg.mxu0
    %1213 = vmatpush.bf16.msra.mxu0 %v936
    %1214 = vmatpush.bf16.msra.mxu0 %v932
    %1215 = vmatpush.bf16.msra.mxu0 %v928
    %1216 = vmatpush.bf16.msra.mxu0 %v924
    %1217 = vmatpush.bf16.msra.mxu0 %v920
    %1218 = vmatpush.bf16.msra.mxu0 %v916
    %1219 = vmatpush.bf16.msra.mxu0 %v912
    %1220 = vmatpush.bf16.msra.mxu0 %v908
    %1221 = vmatmul.bf16.gmra.mxu0 %v315
    %v1222 = vpop.f32.mrf.mxu0
    %v1223 = vadd.f32 %v1204, %v1222
    %v1224 = vpop.f32.mrf.mxu0
    %v1225 = vadd.f32 %v1206, %v1224
    %1226 = vmatmul.bf16.gmra.mxu0 %v319
    %v1227 = vpop.f32.mrf.mxu0
    %v1228 = vadd.f32 %v1209, %v1227
    %v1229 = vpop.f32.mrf.mxu0
    %v1230 = vadd.f32 %v1211, %v1229
    %1231 = vdwg.mxu0
    %1232 = vmatpush.bf16.msra.mxu0 %v968
    %1233 = vmatpush.bf16.msra.mxu0 %v964
    %1234 = vmatpush.bf16.msra.mxu0 %v960
    %1235 = vmatpush.bf16.msra.mxu0 %v956
    %1236 = vmatpush.bf16.msra.mxu0 %v952
    %1237 = vmatpush.bf16.msra.mxu0 %v948
    %1238 = vmatpush.bf16.msra.mxu0 %v944
    %1239 = vmatpush.bf16.msra.mxu0 %v940
    %1240 = vmatmul.bf16.gmra.mxu0 %v316
    %v1241 = vpop.f32.mrf.mxu0
    %v1242 = vadd.f32 %v1223, %v1241
    %v1243 = vpop.f32.mrf.mxu0
    %v1244 = vadd.f32 %v1225, %v1243
    %1245 = vmatmul.bf16.gmra.mxu0 %v320
    %v1246 = vpop.f32.mrf.mxu0
    %v1247 = vadd.f32 %v1228, %v1246
    %v1248 = vpop.f32.mrf.mxu0
    %v1249 = vadd.f32 %v1230, %v1248
    %1250 = vdwg.mxu0
    %1251 = vmatpush.bf16.msra.mxu0 %v873
    %1252 = vmatpush.bf16.msra.mxu0 %v869
    %1253 = vmatpush.bf16.msra.mxu0 %v865
    %1254 = vmatpush.bf16.msra.mxu0 %v861
    %1255 = vmatpush.bf16.msra.mxu0 %v857
    %1256 = vmatpush.bf16.msra.mxu0 %v853
    %1257 = vmatpush.bf16.msra.mxu0 %v849
    %1258 = vmatpush.bf16.msra.mxu0 %v845
    %1259 = vmatmul.bf16.gmra.mxu0 %v313
    %v1260 = vpop.f32.mrf.mxu0
    %v1261 = vadd.f32 %v453, %v1260
    %v1262 = vpop.f32.mrf.mxu0
    %v1263 = vadd.f32 %v453, %v1262
    %1264 = vmatmul.bf16.gmra.mxu0 %v317
    %v1265 = vpop.f32.mrf.mxu0
    %v1266 = vadd.f32 %v453, %v1265
    %v1267 = vpop.f32.mrf.mxu0
    %v1268 = vadd.f32 %v453, %v1267
    %1269 = vdwg.mxu0
    %1270 = vmatpush.bf16.msra.mxu0 %v905
    %1271 = vmatpush.bf16.msra.mxu0 %v901
    %1272 = vmatpush.bf16.msra.mxu0 %v897
    %1273 = vmatpush.bf16.msra.mxu0 %v893
    %1274 = vmatpush.bf16.msra.mxu0 %v889
    %1275 = vmatpush.bf16.msra.mxu0 %v885
    %1276 = vmatpush.bf16.msra.mxu0 %v881
    %1277 = vmatpush.bf16.msra.mxu0 %v877
    %1278 = vmatmul.bf16.gmra.mxu0 %v314
    %v1279 = vpop.f32.mrf.mxu0
    %v1280 = vadd.f32 %v1261, %v1279
    %v1281 = vpop.f32.mrf.mxu0
    %v1282 = vadd.f32 %v1263, %v1281
    %1283 = vmatmul.bf16.gmra.mxu0 %v318
    %v1284 = vpop.f32.mrf.mxu0
    %v1285 = vadd.f32 %v1266, %v1284
    %v1286 = vpop.f32.mrf.mxu0
    %v1287 = vadd.f32 %v1268, %v1286
    %1288 = vdwg.mxu0
    %1289 = vmatpush.bf16.msra.mxu0 %v937
    %1290 = vmatpush.bf16.msra.mxu0 %v933
    %1291 = vmatpush.bf16.msra.mxu0 %v929
    %1292 = vmatpush.bf16.msra.mxu0 %v925
    %1293 = vmatpush.bf16.msra.mxu0 %v921
    %1294 = vmatpush.bf16.msra.mxu0 %v917
    %1295 = vmatpush.bf16.msra.mxu0 %v913
    %1296 = vmatpush.bf16.msra.mxu0 %v909
    %1297 = vmatmul.bf16.gmra.mxu0 %v315
    %v1298 = vpop.f32.mrf.mxu0
    %v1299 = vadd.f32 %v1280, %v1298
    %v1300 = vpop.f32.mrf.mxu0
    %v1301 = vadd.f32 %v1282, %v1300
    %1302 = vmatmul.bf16.gmra.mxu0 %v319
    %v1303 = vpop.f32.mrf.mxu0
    %v1304 = vadd.f32 %v1285, %v1303
    %v1305 = vpop.f32.mrf.mxu0
    %v1306 = vadd.f32 %v1287, %v1305
    %1307 = vdwg.mxu0
    %1308 = vmatpush.bf16.msra.mxu0 %v969
    %1309 = vmatpush.bf16.msra.mxu0 %v965
    %1310 = vmatpush.bf16.msra.mxu0 %v961
    %1311 = vmatpush.bf16.msra.mxu0 %v957
    %1312 = vmatpush.bf16.msra.mxu0 %v953
    %1313 = vmatpush.bf16.msra.mxu0 %v949
    %1314 = vmatpush.bf16.msra.mxu0 %v945
    %1315 = vmatpush.bf16.msra.mxu0 %v941
    %1316 = vmatmul.bf16.gmra.mxu0 %v316
    %v1317 = vpop.f32.mrf.mxu0
    %v1318 = vadd.f32 %v1299, %v1317
    %v1319 = vpop.f32.mrf.mxu0
    %v1320 = vadd.f32 %v1301, %v1319
    %1321 = vmatmul.bf16.gmra.mxu0 %v320
    %v1322 = vpop.f32.mrf.mxu0
    %v1323 = vadd.f32 %v1304, %v1322
    %v1324 = vpop.f32.mrf.mxu0
    %v1325 = vadd.f32 %v1306, %v1324
    %1326 = vdwg.mxu0
    %1327 = vmatpush.bf16.msra.mxu0 %v874
    %1328 = vmatpush.bf16.msra.mxu0 %v870
    %1329 = vmatpush.bf16.msra.mxu0 %v866
    %1330 = vmatpush.bf16.msra.mxu0 %v862
    %1331 = vmatpush.bf16.msra.mxu0 %v858
    %1332 = vmatpush.bf16.msra.mxu0 %v854
    %1333 = vmatpush.bf16.msra.mxu0 %v850
    %1334 = vmatpush.bf16.msra.mxu0 %v846
    %1335 = vmatmul.bf16.gmra.mxu0 %v313
    %v1336 = vpop.f32.mrf.mxu0
    %v1337 = vadd.f32 %v454, %v1336
    %v1338 = vpop.f32.mrf.mxu0
    %v1339 = vadd.f32 %v454, %v1338
    %1340 = vmatmul.bf16.gmra.mxu0 %v317
    %v1341 = vpop.f32.mrf.mxu0
    %v1342 = vadd.f32 %v454, %v1341
    %v1343 = vpop.f32.mrf.mxu0
    %v1344 = vadd.f32 %v454, %v1343
    %1345 = vdwg.mxu0
    %1346 = vmatpush.bf16.msra.mxu0 %v906
    %1347 = vmatpush.bf16.msra.mxu0 %v902
    %1348 = vmatpush.bf16.msra.mxu0 %v898
    %1349 = vmatpush.bf16.msra.mxu0 %v894
    %1350 = vmatpush.bf16.msra.mxu0 %v890
    %1351 = vmatpush.bf16.msra.mxu0 %v886
    %1352 = vmatpush.bf16.msra.mxu0 %v882
    %1353 = vmatpush.bf16.msra.mxu0 %v878
    %1354 = vmatmul.bf16.gmra.mxu0 %v314
    %v1355 = vpop.f32.mrf.mxu0
    %v1356 = vadd.f32 %v1337, %v1355
    %v1357 = vpop.f32.mrf.mxu0
    %v1358 = vadd.f32 %v1339, %v1357
    %1359 = vmatmul.bf16.gmra.mxu0 %v318
    %v1360 = vpop.f32.mrf.mxu0
    %v1361 = vadd.f32 %v1342, %v1360
    %v1362 = vpop.f32.mrf.mxu0
    %v1363 = vadd.f32 %v1344, %v1362
    %1364 = vdwg.mxu0
    %1365 = vmatpush.bf16.msra.mxu0 %v938
    %1366 = vmatpush.bf16.msra.mxu0 %v934
    %1367 = vmatpush.bf16.msra.mxu0 %v930
    %1368 = vmatpush.bf16.msra.mxu0 %v926
    %1369 = vmatpush.bf16.msra.mxu0 %v922
    %1370 = vmatpush.bf16.msra.mxu0 %v918
    %1371 = vmatpush.bf16.msra.mxu0 %v914
    %1372 = vmatpush.bf16.msra.mxu0 %v910
    %1373 = vmatmul.bf16.gmra.mxu0 %v315
    %v1374 = vpop.f32.mrf.mxu0
    %v1375 = vadd.f32 %v1356, %v1374
    %v1376 = vpop.f32.mrf.mxu0
    %v1377 = vadd.f32 %v1358, %v1376
    %1378 = vmatmul.bf16.gmra.mxu0 %v319
    %v1379 = vpop.f32.mrf.mxu0
    %v1380 = vadd.f32 %v1361, %v1379
    %v1381 = vpop.f32.mrf.mxu0
    %v1382 = vadd.f32 %v1363, %v1381
    %1383 = vdwg.mxu0
    %1384 = vmatpush.bf16.msra.mxu0 %v970
    %1385 = vmatpush.bf16.msra.mxu0 %v966
    %1386 = vmatpush.bf16.msra.mxu0 %v962
    %1387 = vmatpush.bf16.msra.mxu0 %v958
    %1388 = vmatpush.bf16.msra.mxu0 %v954
    %1389 = vmatpush.bf16.msra.mxu0 %v950
    %1390 = vmatpush.bf16.msra.mxu0 %v946
    %1391 = vmatpush.bf16.msra.mxu0 %v942
    %1392 = vmatmul.bf16.gmra.mxu0 %v316
    %v1393 = vpop.f32.mrf.mxu0
    %v1394 = vadd.f32 %v1375, %v1393
    %v1395 = vpop.f32.mrf.mxu0
    %v1396 = vadd.f32 %v1377, %v1395
    %1397 = vmatmul.bf16.gmra.mxu0 %v320
    %v1398 = vpop.f32.mrf.mxu0
    %v1399 = vadd.f32 %v1380, %v1398
    %v1400 = vpop.f32.mrf.mxu0
    %v1401 = vadd.f32 %v1382, %v1400
    %1402 = vdwg.mxu0
    %v1403 = vmax.f32 %v1166, 0.0
    %v1404 = vmax.f32 %v1242, 0.0
    %v1405 = vmax.f32 %v1318, 0.0
    %v1406 = vmax.f32 %v1394, 0.0
    %v1407 = vmax.f32 %v1168, 0.0
    %v1408 = vmax.f32 %v1244, 0.0
    %v1409 = vmax.f32 %v1320, 0.0
    %v1410 = vmax.f32 %v1396, 0.0
    %v1411 = vmax.f32 %v1171, 0.0
    %v1412 = vmax.f32 %v1247, 0.0
    %v1413 = vmax.f32 %v1323, 0.0
    %v1414 = vmax.f32 %v1399, 0.0
    %v1415 = vmax.f32 %v1173, 0.0
    %v1416 = vmax.f32 %v1249, 0.0
    %v1417 = vmax.f32 %v1325, 0.0
    %v1418 = vmax.f32 %v1401, 0.0
    %v1419 = vld [vmem:[%s7] sm:$0xf]
    %v1421 = vperm.slane %v1419, 0
    %v1422 = vperm.slane %v1419, 1
    %v1423 = vperm.slane %v1419, 2
    %v1424 = vperm.slane %v1419, 3
    %v1429 = vmul.f32 %v1403, %v1421
    %v1430 = vmul.f32 %v1404, %v1422
    %v1431 = vmul.f32 %v1405, %v1423
    %v1432 = vmul.f32 %v1406, %v1424
    %v1433 = vmul.f32 %v1407, %v1421
    %v1434 = vmul.f32 %v1408, %v1422
    %v1435 = vmul.f32 %v1409, %v1423
    %v1436 = vmul.f32 %v1410, %v1424
    %v1437 = vmul.f32 %v1411, %v1421
    %v1438 = vmul.f32 %v1412, %v1422
    %v1439 = vmul.f32 %v1413, %v1423
    %v1440 = vmul.f32 %v1414, %v1424
    %v1441 = vmul.f32 %v1415, %v1421
    %v1442 = vmul.f32 %v1416, %v1422
    %v1443 = vmul.f32 %v1417, %v1423
    %v1444 = vmul.f32 %v1418, %v1424
    %v1445 = vadd.f32 %v1429, %v1430
    %v1446 = vadd.f32 %v1445, %v1431
    %v1447 = vadd.f32 %v1446, %v1432
    %1448 = vadd.xlane.f32.xlu0 %v1447
    %v1449 = vpop.xlane.xlu0 %1448
    %v1450 = vadd.f32 %v1433, %v1434
    %v1451 = vadd.f32 %v1450, %v1435
    %v1452 = vadd.f32 %v1451, %v1436
    %1453 = vadd.xlane.f32.xlu0 %v1452
    %v1454 = vpop.xlane.xlu0 %1453
    %v1455 = vadd.f32 %v1437, %v1438
    %v1456 = vadd.f32 %v1455, %v1439
    %v1457 = vadd.f32 %v1456, %v1440
    %1458 = vadd.xlane.f32.xlu0 %v1457
    %v1459 = vpop.xlane.xlu0 %1458
    %v1460 = vadd.f32 %v1441, %v1442
    %v1461 = vadd.f32 %v1460, %v1443
    %v1462 = vadd.f32 %v1461, %v1444
    %1463 = vadd.xlane.f32.xlu0 %v1462
    %v1464 = vpop.xlane.xlu0 %1463
    %v1465 = vld [vmem:[#allocation2] sm:$0x1]
    %1467 = vset.pattern.permute.xlu0 0
    %1468 = vperm.xlu0 %1467, %v1465
    %v1469 = vpop.permute.xlu0 %1468
    %v1471 = vperm.slane %v1469, 0
    %v1472 = vadd.f32 %v1449, %v1471
    %v1473 = vadd.f32 %v1454, %v1471
    %v1474 = vadd.f32 %v1459, %v1471
    %v1475 = vadd.f32 %v1464, %v1471
    %v1480 = vlaneseq
    %v1481 = vand.u32 %v1480, 127
    %v1482 = vperm.slane %v1472, %v1481
    %v1483 = vadd.s32 %v1481, 4294967288
    %v1484 = vperm.slane %v1473, %v1483
    %vm1485 = vcmask 130112
    %v1486 = vsel %vm1485, %v1484, %v1482
    %v1487 = vadd.s32 %v1481, 4294967280
    %v1488 = vperm.slane %v1474, %v1487
    %vm1489 = vcmask 195712
    %v1490 = vsel %vm1489, %v1488, %v1486
    %v1491 = vadd.s32 %v1481, 4294967272
    %v1492 = vperm.slane %v1475, %v1491
    %vm1493 = vcmask 261312
    %v1494 = vsel %vm1493, %v1492, %v1490
    %vm1496 = vcmask 253952
    %1497 = vst.msk [vmem:[#allocation6] sm:$0x1] %vm1496, %v1494
    // Predicated region
    $region42: #{tpu_custom_call.1} parent=1 // pred_check
      _
    $region43: #{tpu_custom_call.1} parent=1 // pred_check_branch
      %1499 = sbr.rel (0) target = $region45
    $region44: #{tpu_custom_call.1} parent=1 // pred_region
      %1501 = vsyncadd [#allocation5], 0
      %s1503 = sshll.u32 [#allocation6], 4
      %s1504 = int_to_ptr.vmem [resolvable:$true] %s1503
      %s1505 = sshll.u32 %s9, 4
      %s1506 = int_to_ptr.hbm [resolvable:$true] %s1505
      %1508 = dma.vmem_to_hbm [thread:$0]  %s1504, 16, %s1506, [#allocation5]
    $region45: #{tpu_custom_call.1} parent=1 // pred_fallthru
      _
    // Predicated region
    $region46: #{tpu_custom_call.1} parent=1 // pred_check
      _
    $region47: #{tpu_custom_call.1} parent=1 // pred_check_branch
      %1510 = sbr.rel (0) target = $region49
    $region48: #{tpu_custom_call.1} parent=1 // pred_region
      %1512 = dma.done [#allocation5], 16
    $region49: #{tpu_custom_call.1} parent=1 // pred_fallthru
      _
    %1513 = vsyncpa [#allocation4], 1
    %1514 = vsyncpa [#allocation5], 1

</llo_original>
